<compile_context>
chip_gen: v7x
topology: tpu7x:2x2x1
jax: 0.10.0
libtpu: 0.0.40
codegen_flags: <defaults>
</compile_context>

<pallas_src>
import functools

import jax
import jax.numpy as jnp
from jax.experimental import pallas as pl
from jax.experimental.pallas import tpu as pltpu


# ----------------------------------------------------------------------------
# Kernel
# ----------------------------------------------------------------------------
def _layernorm(x, g, b, eps=1e-5):
    mu = jnp.mean(x, axis=-1, keepdims=True)
    var = jnp.mean((x - mu) ** 2, axis=-1, keepdims=True)
    return (x - mu) * jax.lax.rsqrt(var + eps) * g + b


def mapper_kernel(
    x_ref,
    wl_ref, bl_ref,
    ln1g_ref, ln1b_ref, wqkv_ref, bqkv_ref, wo_ref, bo_ref,
    ln2g_ref, ln2b_ref, w1_ref, bm1_ref, w2_ref, bm2_ref,
    o_ref,
    y_ref,                       # VMEM scratch: (R, H) f32 activation carried over layers
    *, num_heads,
):
    bf16, f32 = jnp.bfloat16, jnp.float32
    bb, L, V = x_ref.shape
    H = wqkv_ref.shape[0]        # per-layer weight refs are (H, 3H) etc. (layer dim squeezed)
    hd = H // num_heads
    R = bb * L                   # flattened (batch_block, seq) rows
    l = pl.program_id(1)

    # --- layer step 0: linear projection (R, V) @ (V, H) into the carried activation ---
    @pl.when(l == 0)
    def _():
        x = x_ref[...].reshape(R, V)                               # bf16 (pre-cast in wrapper)
        y_ref[...] = (jnp.dot(x, wl_ref[...], preferred_element_type=f32)
                      + bl_ref[...])

    y = y_ref[...]

    # --- self-attention block (pre-norm) -------------------------------------
    h = _layernorm(y, ln1g_ref[...], ln1b_ref[...])
    qkv = (jnp.dot(h.astype(bf16), wqkv_ref[...], preferred_element_type=f32)
           + bqkv_ref[...])                                        # (R, 3H); 1/sqrt(hd) baked into Wq/bq
    q = qkv[:, :H].astype(bf16)
    k = qkv[:, H:2 * H].astype(bf16)
    v = qkv[:, 2 * H:].astype(bf16)

    # heads -> leading axis, batched over (batch, head).  Only 2-D transposes,
    # leading-dim reshapes and leading-axis concats (layout-safe; no lane-splitting
    # reshapes, no sub-lane per-head slices).
    def heads_t(t):              # (R, H) -> (bb*NH, hd, L)
        rows = [t[b * L:(b + 1) * L, :].T.reshape(num_heads, hd, L) for b in range(bb)]
        return rows[0] if bb == 1 else jnp.concatenate(rows, axis=0)

    qT = heads_t(q)              # (bb*NH, hd, L)
    kT = heads_t(k)
    vT = heads_t(v)

    s = jnp.einsum("hdl,hdm->hlm", qT, kT, preferred_element_type=f32)   # (bb*NH, L, L)
    s = s - jnp.max(s, axis=-1, keepdims=True)
    e = jnp.exp(s)
    p = e * pl.reciprocal(jnp.sum(e, axis=-1, keepdims=True), approx=True)

    aT = jnp.einsum("hdm,hlm->hdl", vT, p.astype(bf16),
                    preferred_element_type=f32)                          # (bb*NH, hd, L)
    attn_rows = [aT[b * num_heads:(b + 1) * num_heads].reshape(H, L).T   # (L, H) per batch
                 for b in range(bb)]
    attn = attn_rows[0] if bb == 1 else jnp.concatenate(attn_rows, axis=0)

    y = y + (jnp.dot(attn.astype(bf16), wo_ref[...], preferred_element_type=f32)
             + bo_ref[...])

    # --- MLP block (pre-norm, 4x expansion, tanh-GELU) ------------------------
    h2 = _layernorm(y, ln2g_ref[...], ln2b_ref[...])
    m = (jnp.dot(h2.astype(bf16), w1_ref[...], preferred_element_type=f32)
         + bm1_ref[...])
    m = jax.nn.gelu(m, approximate=True)
    y = y + (jnp.dot(m.astype(bf16), w2_ref[...], preferred_element_type=f32)
             + bm2_ref[...])

    y_ref[...] = y

    # --- last layer: write the result (lane-dense at real H=768) --------------
    @pl.when(l == pl.num_programs(1) - 1)
    def _():
        o_ref[...] = y.reshape(bb, L, H)


# ----------------------------------------------------------------------------
# Pallas wrapper: one pallas_call, grid = (row_blocks, layers)
# ----------------------------------------------------------------------------
def transformer_mapper(x, packed, num_heads, block_b=None):
    B, L, V = x.shape
    H = packed["w_lin"].shape[1]
    NL = packed["w_qkv"].shape[0]
    F = packed["w_m1"].shape[2]
    if block_b is None:
        # Maximize R = block_b*L (fills MXU on v5e/v6e).  On v7x pass block_b <= B//2
        # so the "parallel" row-block axis can feed both TensorCores.
        block_b = B
    assert B % block_b == 0

    def layer_spec(shape):                 # per-layer weight, streamed over the l axis
        nd = len(shape)
        return pl.BlockSpec((None,) + tuple(shape),
                            lambda i, l, nd=nd: (l,) + (0,) * nd)

    def const_spec(shape):                 # layer-independent weight (stays resident)
        nd = len(shape)
        return pl.BlockSpec(tuple(shape), lambda i, l, nd=nd: (0,) * nd)

    kernel = functools.partial(mapper_kernel, num_heads=num_heads)
    return pl.pallas_call(
        kernel,
        out_shape=jax.ShapeDtypeStruct((B, L, H), jnp.float32),
        grid=(B // block_b, NL),
        in_specs=[
            pl.BlockSpec((block_b, L, V), lambda i, l: (i, 0, 0)),
            const_spec((V, H)), const_spec((1, H)),
            layer_spec((1, H)), layer_spec((1, H)),
            layer_spec((H, 3 * H)), layer_spec((1, 3 * H)),
            layer_spec((H, H)), layer_spec((1, H)),
            layer_spec((1, H)), layer_spec((1, H)),
            layer_spec((H, F)), layer_spec((1, F)),
            layer_spec((F, H)), layer_spec((1, H)),
        ],
        out_specs=pl.BlockSpec((block_b, L, H), lambda i, l: (i, 0, 0)),
        scratch_shapes=[pltpu.VMEM((block_b * L, H), jnp.float32)],   # carried activation y
        compiler_params=pltpu.CompilerParams(
            dimension_semantics=("parallel", "arbitrary"),
            # Explicit budget: double-buffered per-layer bf16 weights (~2x14 MiB at
            # ClipCap H=768/F=3072) + f32 activations; 60 MiB fits v7x's 64 MiB physical
            # and overrides the 16/32 MiB default scoped limits on v5e/v6e.
            vmem_limit_bytes=60 * 1024 * 1024),
    )(
        x.astype(jnp.bfloat16),            # pre-cast: halves input DMA, no in-kernel cast
        packed["w_lin"], packed["b_lin"],
        packed["ln1_g"], packed["ln1_b"], packed["w_qkv"], packed["b_qkv"],
        packed["w_o"], packed["b_o"],
        packed["ln2_g"], packed["ln2_b"], packed["w_m1"], packed["b_m1"],
        packed["w_m2"], packed["b_m2"],
    )


# ----------------------------------------------------------------------------
# One-time weight packing: (in,out) layout, fused QKV (with 1/sqrt(hd) folded into
# Wq/bq), bf16 weights, stacked over layers.
# ----------------------------------------------------------------------------
def pack_params(params, num_heads):
    bf16 = jnp.bfloat16
    lw = params["linear"]
    H = lw["w"].shape[0]
    scale = (H // num_heads) ** -0.5
    packed = {
        "w_lin": lw["w"].T.astype(bf16),          # (V, H)
        "b_lin": lw["b"][None, :],                # (1, H) f32
    }

    def stack(fn):
        return jnp.stack([fn(p) for p in params["layers"]], axis=0)

    packed["ln1_g"] = stack(lambda p: p["ln1_g"][None, :])
    packed["ln1_b"] = stack(lambda p: p["ln1_b"][None, :])
    packed["w_qkv"] = stack(lambda p: jnp.concatenate(
        [p["wq"].T * scale, p["wk"].T, p["wv"].T], axis=1).astype(bf16))   # (NL, H, 3H)
    packed["b_qkv"] = stack(lambda p: jnp.concatenate(
        [p["bq"] * scale, p["bk"], p["bv"]])[None, :])                     # (NL, 1, 3H) f32
    packed["w_o"] = stack(lambda p: p["wo"].T.astype(bf16))                # (NL, H, H)
    packed["b_o"] = stack(lambda p: p["bo"][None, :])
    packed["ln2_g"] = stack(lambda p: p["ln2_g"][None, :])
    packed["ln2_b"] = stack(lambda p: p["ln2_b"][None, :])
    packed["w_m1"] = stack(lambda p: p["w1"].T.astype(bf16))               # (NL, H, F)
    packed["b_m1"] = stack(lambda p: p["b1"][None, :])
    packed["w_m2"] = stack(lambda p: p["w2"].T.astype(bf16))               # (NL, F, H)
    packed["b_m2"] = stack(lambda p: p["b2"][None, :])
    return packed


# ----------------------------------------------------------------------------
# Deterministic parameter init (synthetic; PyTorch (out, in) layout)
# ----------------------------------------------------------------------------
def _lin_init(key, fan_in, fan_out):
    kw, kb = jax.random.split(key)
    w = jax.random.normal(kw, (fan_out, fan_in), jnp.float32) * (fan_in ** -0.5)
    b = jax.random.normal(kb, (fan_out,), jnp.float32) * 0.02
    return w, b


def init_params(key, visual_prefix_size, hidden_size, num_layers, mlp_ratio=4):
    V, H, F = visual_prefix_size, hidden_size, mlp_ratio * hidden_size
    keys = jax.random.split(key, num_layers + 1)
    lw, lb = _lin_init(keys[0], V, H)
    layers = []
    for li in range(num_layers):
        lk = jax.random.split(keys[li + 1], 6)
        wq, bq = _lin_init(lk[0], H, H)
        wk, bk = _lin_init(lk[1], H, H)
        wv, bv = _lin_init(lk[2], H, H)
        wo, bo = _lin_init(lk[3], H, H)
        w1, b1 = _lin_init(lk[4], H, F)
        w2, b2 = _lin_init(lk[5], F, H)
        layers.append(dict(
            ln1_g=jnp.ones((H,), jnp.float32), ln1_b=jnp.zeros((H,), jnp.float32),
            wq=wq, bq=bq, wk=wk, bk=bk, wv=wv, bv=bv, wo=wo, bo=bo,
            ln2_g=jnp.ones((H,), jnp.float32), ln2_b=jnp.zeros((H,), jnp.float32),
            w1=w1, b1=b1, w2=w2, b2=b2,
        ))
    return {"linear": {"w": lw, "b": lb}, "layers": layers}


# ----------------------------------------------------------------------------
# Pure-JAX reference: same module math, same mixed precision as the kernel
# (bf16 weights / matmul inputs, f32 accumulation + f32 LN/softmax/GELU).
# ----------------------------------------------------------------------------
def reference(x, params, num_heads):
    bf16, f32 = jnp.bfloat16, jnp.float32
    lw = params["linear"]
    B, L, V = x.shape
    H = lw["w"].shape[0]
    y = (jnp.dot(x.reshape(B * L, V).astype(bf16), lw["w"].T.astype(bf16),
                 preferred_element_type=f32) + lw["b"][None, :])
    for p in params["layers"]:
        hd = H // num_heads
        scale = hd ** -0.5
        h = _layernorm(y, p["ln1_g"], p["ln1_b"])
        hb = h.astype(bf16)
        q = (jnp.dot(hb, p["wq"].T.astype(bf16), preferred_element_type=f32) + p["bq"]) * scale
        k = jnp.dot(hb, p["wk"].T.astype(bf16), preferred_element_type=f32) + p["bk"]
        v = jnp.dot(hb, p["wv"].T.astype(bf16), preferred_element_type=f32) + p["bv"]
        q4 = q.reshape(B, L, num_heads, hd)
        k4 = k.reshape(B, L, num_heads, hd)
        v4 = v.reshape(B, L, num_heads, hd)
        s = jnp.einsum("blhd,bmhd->bhlm", q4.astype(bf16), k4.astype(bf16),
                       preferred_element_type=f32)
        s = s - s.max(-1, keepdims=True)
        e = jnp.exp(s)
        pr = e / e.sum(-1, keepdims=True)
        a = jnp.einsum("bhlm,bmhd->blhd", pr.astype(bf16), v4.astype(bf16),
                       preferred_element_type=f32).reshape(B * L, H)
        y = y + jnp.dot(a.astype(bf16), p["wo"].T.astype(bf16),
                        preferred_element_type=f32) + p["bo"]
        h2 = _layernorm(y, p["ln2_g"], p["ln2_b"])
        m = (jnp.dot(h2.astype(bf16), p["w1"].T.astype(bf16),
                     preferred_element_type=f32) + p["b1"])
        m = jax.nn.gelu(m, approximate=True)
        y = y + (jnp.dot(m.astype(bf16), p["w2"].T.astype(bf16),
                         preferred_element_type=f32) + p["b2"])
    return y.reshape(B, L, H)


# ----------------------------------------------------------------------------
if __name__ == "__main__":
    B, L = 2, 8                       # batch, visual prefix length
    visual_prefix_size = 64           # params.visual_prefix_size
    hidden_size = 32                  # params.hidden_size
    num_heads = 4                     # params.clip_transformer_num_heads
    num_layers = 2                    # params.clip_transformer_num_layers

    key = jax.random.PRNGKey(0)
    kx, kp = jax.random.split(key)
    x = jax.random.normal(kx, (B, L, visual_prefix_size), jnp.float32)
    params = init_params(kp, visual_prefix_size, hidden_size, num_layers)
    packed = pack_params(params, num_heads)   # one-time transpose / QKV-fuse / scale-fold / bf16

    out = transformer_mapper(x, packed, num_heads)
    out = jax.block_until_ready(out)

    ref = reference(x, params, num_heads)
    assert out.shape == (B, L, hidden_size)
    assert jnp.allclose(out, ref, rtol=3e-2, atol=3e-2), "Pallas/ref mismatch"

    print("KERNEL_OK")
</pallas_src>

<mosaic_0001>
module attributes {stable_mosaic.version = 11 : i64} {
  func.func @mapper_kernel(%arg0: i32, %arg1: i32, %arg2: memref<2x8x64xbf16, #tpu.memory_space<vmem>>, %arg3: memref<64x32xbf16, #tpu.memory_space<vmem>>, %arg4: memref<1x32xf32, #tpu.memory_space<vmem>>, %arg5: memref<1x1x32xf32, #tpu.memory_space<vmem>>, %arg6: memref<1x1x32xf32, #tpu.memory_space<vmem>>, %arg7: memref<1x32x96xbf16, #tpu.memory_space<vmem>>, %arg8: memref<1x1x96xf32, #tpu.memory_space<vmem>>, %arg9: memref<1x32x32xbf16, #tpu.memory_space<vmem>>, %arg10: memref<1x1x32xf32, #tpu.memory_space<vmem>>, %arg11: memref<1x1x32xf32, #tpu.memory_space<vmem>>, %arg12: memref<1x1x32xf32, #tpu.memory_space<vmem>>, %arg13: memref<1x32x128xbf16, #tpu.memory_space<vmem>>, %arg14: memref<1x1x128xf32, #tpu.memory_space<vmem>>, %arg15: memref<1x128x32xbf16, #tpu.memory_space<vmem>>, %arg16: memref<1x1x32xf32, #tpu.memory_space<vmem>>, %arg17: memref<2x8x32xf32, #tpu.memory_space<vmem>>, %arg18: memref<16x32xf32, #tpu.memory_space<vmem>>) attributes {dimension_semantics = [#tpu.dimension_semantics<parallel>, #tpu.dimension_semantics<arbitrary>], iteration_bounds = array<i64: 1, 2>, scalar_prefetch = 0 : i64, scratch_operands = 1 : i64, tpu.core_type = #tpu.core_type<tc>, window_params = [{transform_indices = @transform_0, window_bounds = array<i64: 2, 8, 64>}, {pipeline_mode = #tpu.pipeline_mode<synchronous>, transform_indices = @transform_1, window_bounds = array<i64: 64, 32>}, {pipeline_mode = #tpu.pipeline_mode<synchronous>, transform_indices = @transform_2, window_bounds = array<i64: 1, 32>}, {transform_indices = @transform_3, window_bounds = array<i64: 1, 1, 32>}, {transform_indices = @transform_4, window_bounds = array<i64: 1, 1, 32>}, {transform_indices = @transform_5, window_bounds = array<i64: 1, 32, 96>}, {transform_indices = @transform_6, window_bounds = array<i64: 1, 1, 96>}, {transform_indices = @transform_7, window_bounds = array<i64: 1, 32, 32>}, {transform_indices = @transform_8, window_bounds = array<i64: 1, 1, 32>}, {transform_indices = @transform_9, window_bounds = array<i64: 1, 1, 32>}, {transform_indices = @transform_10, window_bounds = array<i64: 1, 1, 32>}, {transform_indices = @transform_11, window_bounds = array<i64: 1, 32, 128>}, {transform_indices = @transform_12, window_bounds = array<i64: 1, 1, 128>}, {transform_indices = @transform_13, window_bounds = array<i64: 1, 128, 32>}, {transform_indices = @transform_14, window_bounds = array<i64: 1, 1, 32>}, {transform_indices = @transform_15, window_bounds = array<i64: 2, 8, 32>}]} {
    %c0_i32 = arith.constant 0 : i32
    %0 = arith.cmpi eq, %arg1, %c0_i32 : i32
    %1 = arith.extui %0 : i1 to i32
    %c0_i32_0 = arith.constant 0 : i32
    %2 = arith.cmpi ne, %1, %c0_i32_0 : i32
    scf.if %2 {
      %c0_62 = arith.constant 0 : index
      %c0_63 = arith.constant 0 : index
      %c0_64 = arith.constant 0 : index
      %154 = vector.load %arg2[%c0_62, %c0_63, %c0_64] : memref<2x8x64xbf16, #tpu.memory_space<vmem>>, vector<2x8x64xbf16>
      %155 = vector.shape_cast %154 : vector<2x8x64xbf16> to vector<16x64xbf16>
      %c0_65 = arith.constant 0 : index
      %c0_66 = arith.constant 0 : index
      %156 = vector.load %arg3[%c0_65, %c0_66] : memref<64x32xbf16, #tpu.memory_space<vmem>>, vector<64x32xbf16>
      %cst_67 = arith.constant dense<0.000000e+00> : vector<16x32xf32>
      %157 = tpu.matmul %155, %156, %cst_67 {dimension_numbers = #tpu.dot_dimension_numbers<[1], [0], [0], [1], [0, 0, 1, 1], [], []>} : vector<16x64xbf16>, vector<64x32xbf16>, vector<16x32xf32> -> vector<16x32xf32>
      %c0_68 = arith.constant 0 : index
      %c0_69 = arith.constant 0 : index
      %158 = vector.load %arg4[%c0_68, %c0_69] : memref<1x32xf32, #tpu.memory_space<vmem>>, vector<1x32xf32>
      %159 = vector.broadcast %158 : vector<1x32xf32> to vector<16x32xf32>
      %160 = arith.addf %157, %159 : vector<16x32xf32>
      %c0_70 = arith.constant 0 : index
      %c0_71 = arith.constant 0 : index
      %161 = vector.load %arg18[%c0_70, %c0_71] : memref<16x32xf32, #tpu.memory_space<vmem>>, vector<16x32xf32>
      tpu.vector_store %arg18[%c0_70, %c0_71], %160 {strides = array<i32>} : memref<16x32xf32, #tpu.memory_space<vmem>>, vector<16x32xf32>,
    } else {
    }
    %c0 = arith.constant 0 : index
    %c0_1 = arith.constant 0 : index
    %3 = vector.load %arg18[%c0, %c0_1] : memref<16x32xf32, #tpu.memory_space<vmem>>, vector<16x32xf32>
    %c0_2 = arith.constant 0 : index
    %c0_3 = arith.constant 0 : index
    %c0_4 = arith.constant 0 : index
    %4 = vector.load %arg5[%c0_2, %c0_3, %c0_4] : memref<1x1x32xf32, #tpu.memory_space<vmem>>, vector<1x1x32xf32>
    %5 = vector.shape_cast %4 : vector<1x1x32xf32> to vector<1x32xf32>
    %c0_5 = arith.constant 0 : index
    %c0_6 = arith.constant 0 : index
    %c0_7 = arith.constant 0 : index
    %6 = vector.load %arg6[%c0_5, %c0_6, %c0_7] : memref<1x1x32xf32, #tpu.memory_space<vmem>>, vector<1x1x32xf32>
    %7 = vector.shape_cast %6 : vector<1x1x32xf32> to vector<1x32xf32>
    %cst = arith.constant dense<0.000000e+00> : vector<16xf32>
    %8 = vector.multi_reduction <add>, %3, %cst [1] : vector<16x32xf32> to vector<16xf32>
    %9 = vector.shape_cast %8 : vector<16xf32> to vector<16x1xf32>
    %cst_8 = arith.constant 3.200000e+01 : f32
    %10 = vector.broadcast %cst_8 : f32 to vector<16x1xf32>
    %11 = arith.divf %9, %10 : vector<16x1xf32>
    %12 = vector.broadcast %11 : vector<16x1xf32> to vector<16x32xf32>
    %13 = arith.subf %3, %12 : vector<16x32xf32>
    %14 = arith.mulf %13, %13 : vector<16x32xf32>
    %cst_9 = arith.constant dense<0.000000e+00> : vector<16xf32>
    %15 = vector.multi_reduction <add>, %14, %cst_9 [1] : vector<16x32xf32> to vector<16xf32>
    %16 = vector.shape_cast %15 : vector<16xf32> to vector<16x1xf32>
    %cst_10 = arith.constant 3.200000e+01 : f32
    %17 = vector.broadcast %cst_10 : f32 to vector<16x1xf32>
    %18 = arith.divf %16, %17 : vector<16x1xf32>
    %19 = vector.broadcast %11 : vector<16x1xf32> to vector<16x32xf32>
    %20 = arith.subf %3, %19 : vector<16x32xf32>
    %cst_11 = arith.constant 9.99999974E-6 : f32
    %21 = vector.broadcast %cst_11 : f32 to vector<16x1xf32>
    %22 = arith.addf %18, %21 : vector<16x1xf32>
    %23 = math.rsqrt %22 : vector<16x1xf32>
    %24 = vector.broadcast %23 : vector<16x1xf32> to vector<16x32xf32>
    %25 = arith.mulf %20, %24 : vector<16x32xf32>
    %26 = vector.broadcast %5 : vector<1x32xf32> to vector<16x32xf32>
    %27 = arith.mulf %25, %26 : vector<16x32xf32>
    %28 = vector.broadcast %7 : vector<1x32xf32> to vector<16x32xf32>
    %29 = arith.addf %27, %28 : vector<16x32xf32>
    %30 = arith.truncf %29 : vector<16x32xf32> to vector<16x32xbf16>
    %c0_12 = arith.constant 0 : index
    %c0_13 = arith.constant 0 : index
    %c0_14 = arith.constant 0 : index
    %31 = vector.load %arg7[%c0_12, %c0_13, %c0_14] : memref<1x32x96xbf16, #tpu.memory_space<vmem>>, vector<1x32x96xbf16>
    %32 = vector.shape_cast %31 : vector<1x32x96xbf16> to vector<32x96xbf16>
    %cst_15 = arith.constant dense<0.000000e+00> : vector<16x96xf32>
    %33 = tpu.matmul %30, %32, %cst_15 {dimension_numbers = #tpu.dot_dimension_numbers<[1], [0], [0], [1], [0, 0, 1, 1], [], []>} : vector<16x32xbf16>, vector<32x96xbf16>, vector<16x96xf32> -> vector<16x96xf32>
    %c0_16 = arith.constant 0 : index
    %c0_17 = arith.constant 0 : index
    %c0_18 = arith.constant 0 : index
    %34 = vector.load %arg8[%c0_16, %c0_17, %c0_18] : memref<1x1x96xf32, #tpu.memory_space<vmem>>, vector<1x1x96xf32>
    %35 = vector.shape_cast %34 : vector<1x1x96xf32> to vector<1x96xf32>
    %36 = vector.broadcast %35 : vector<1x96xf32> to vector<16x96xf32>
    %37 = arith.addf %33, %36 : vector<16x96xf32>
    %38 = vector.extract_strided_slice %37 {offsets = [0, 0], sizes = [16, 32], strides = [1, 1]} : vector<16x96xf32> to vector<16x32xf32>
    %39 = arith.truncf %38 : vector<16x32xf32> to vector<16x32xbf16>
    %40 = vector.extract_strided_slice %37 {offsets = [0, 32], sizes = [16, 32], strides = [1, 1]} : vector<16x96xf32> to vector<16x32xf32>
    %41 = arith.truncf %40 : vector<16x32xf32> to vector<16x32xbf16>
    %42 = vector.extract_strided_slice %37 {offsets = [0, 64], sizes = [16, 32], strides = [1, 1]} : vector<16x96xf32> to vector<16x32xf32>
    %43 = arith.truncf %42 : vector<16x32xf32> to vector<16x32xbf16>
    %44 = vector.extract_strided_slice %39 {offsets = [0, 0], sizes = [8, 32], strides = [1, 1]} : vector<16x32xbf16> to vector<8x32xbf16>
    %45 = tpu.transpose %44, [1, 0] : vector<8x32xbf16> -> vector<32x8xbf16>
    %46 = vector.shape_cast %45 : vector<32x8xbf16> to vector<4x8x8xbf16>
    %47 = vector.extract_strided_slice %39 {offsets = [8, 0], sizes = [8, 32], strides = [1, 1]} : vector<16x32xbf16> to vector<8x32xbf16>
    %48 = tpu.transpose %47, [1, 0] : vector<8x32xbf16> -> vector<32x8xbf16>
    %49 = vector.shape_cast %48 : vector<32x8xbf16> to vector<4x8x8xbf16>
    %50 = tpu.concatenate %46, %49 in 0 : vector<4x8x8xbf16>, vector<4x8x8xbf16> -> vector<8x8x8xbf16>
    %51 = vector.extract_strided_slice %41 {offsets = [0, 0], sizes = [8, 32], strides = [1, 1]} : vector<16x32xbf16> to vector<8x32xbf16>
    %52 = tpu.transpose %51, [1, 0] : vector<8x32xbf16> -> vector<32x8xbf16>
    %53 = vector.shape_cast %52 : vector<32x8xbf16> to vector<4x8x8xbf16>
    %54 = vector.extract_strided_slice %41 {offsets = [8, 0], sizes = [8, 32], strides = [1, 1]} : vector<16x32xbf16> to vector<8x32xbf16>
    %55 = tpu.transpose %54, [1, 0] : vector<8x32xbf16> -> vector<32x8xbf16>
    %56 = vector.shape_cast %55 : vector<32x8xbf16> to vector<4x8x8xbf16>
    %57 = tpu.concatenate %53, %56 in 0 : vector<4x8x8xbf16>, vector<4x8x8xbf16> -> vector<8x8x8xbf16>
    %58 = vector.extract_strided_slice %43 {offsets = [0, 0], sizes = [8, 32], strides = [1, 1]} : vector<16x32xbf16> to vector<8x32xbf16>
    %59 = tpu.transpose %58, [1, 0] : vector<8x32xbf16> -> vector<32x8xbf16>
    %60 = vector.shape_cast %59 : vector<32x8xbf16> to vector<4x8x8xbf16>
    %61 = vector.extract_strided_slice %43 {offsets = [8, 0], sizes = [8, 32], strides = [1, 1]} : vector<16x32xbf16> to vector<8x32xbf16>
    %62 = tpu.transpose %61, [1, 0] : vector<8x32xbf16> -> vector<32x8xbf16>
    %63 = vector.shape_cast %62 : vector<32x8xbf16> to vector<4x8x8xbf16>
    %64 = tpu.concatenate %60, %63 in 0 : vector<4x8x8xbf16>, vector<4x8x8xbf16> -> vector<8x8x8xbf16>
    "tpu.trace_start"() <{level = 10 : i32, message = "hdl,hdm->hlm"}> : () -> ()
    %cst_19 = arith.constant dense<0.000000e+00> : vector<8x8x8xf32>
    %65 = tpu.matmul %50, %57, %cst_19 {dimension_numbers = #tpu.dot_dimension_numbers<[1], [1], [2], [2], [0, 0, 0, 2, 1, 2], [0], [0]>} : vector<8x8x8xbf16>, vector<8x8x8xbf16>, vector<8x8x8xf32> -> vector<8x8x8xf32>
    "tpu.trace_stop"() : () -> ()
    %cst_20 = arith.constant dense<0xFF800000> : vector<8x8xf32>
    %66 = vector.multi_reduction <maximumf>, %65, %cst_20 [2] : vector<8x8x8xf32> to vector<8x8xf32>
    %67 = vector.shape_cast %66 : vector<8x8xf32> to vector<8x8x1xf32>
    %68 = vector.broadcast %67 : vector<8x8x1xf32> to vector<8x8x8xf32>
    %69 = arith.subf %65, %68 : vector<8x8x8xf32>
    %70 = math.exp %69 : vector<8x8x8xf32>
    %cst_21 = arith.constant dense<0.000000e+00> : vector<8x8xf32>
    %71 = vector.multi_reduction <add>, %70, %cst_21 [2] : vector<8x8x8xf32> to vector<8x8xf32>
    %72 = vector.shape_cast %71 : vector<8x8xf32> to vector<8x8x1xf32>
    %73 = tpu.reciprocal %72 {approx = true} : vector<8x8x1xf32> -> vector<8x8x1xf32>
    %74 = vector.broadcast %73 : vector<8x8x1xf32> to vector<8x8x8xf32>
    %75 = arith.mulf %70, %74 : vector<8x8x8xf32>
    %76 = arith.truncf %75 : vector<8x8x8xf32> to vector<8x8x8xbf16>
    "tpu.trace_start"() <{level = 10 : i32, message = "hdm,hlm->hdl"}> : () -> ()
    %cst_22 = arith.constant dense<0.000000e+00> : vector<8x8x8xf32>
    %77 = tpu.matmul %64, %76, %cst_22 {dimension_numbers = #tpu.dot_dimension_numbers<[2], [2], [1], [1], [0, 0, 0, 1, 1, 1], [0], [0]>} : vector<8x8x8xbf16>, vector<8x8x8xbf16>, vector<8x8x8xf32> -> vector<8x8x8xf32>
    "tpu.trace_stop"() : () -> ()
    %78 = vector.extract_strided_slice %77 {offsets = [0, 0, 0], sizes = [4, 8, 8], strides = [1, 1, 1]} : vector<8x8x8xf32> to vector<4x8x8xf32>
    %79 = vector.shape_cast %78 : vector<4x8x8xf32> to vector<32x8xf32>
    %80 = tpu.transpose %79, [1, 0] : vector<32x8xf32> -> vector<8x32xf32>
    %81 = vector.extract_strided_slice %77 {offsets = [4, 0, 0], sizes = [4, 8, 8], strides = [1, 1, 1]} : vector<8x8x8xf32> to vector<4x8x8xf32>
    %82 = vector.shape_cast %81 : vector<4x8x8xf32> to vector<32x8xf32>
    %83 = tpu.transpose %82, [1, 0] : vector<32x8xf32> -> vector<8x32xf32>
    %84 = tpu.concatenate %80, %83 in 0 : vector<8x32xf32>, vector<8x32xf32> -> vector<16x32xf32>
    %85 = arith.truncf %84 : vector<16x32xf32> to vector<16x32xbf16>
    %c0_23 = arith.constant 0 : index
    %c0_24 = arith.constant 0 : index
    %c0_25 = arith.constant 0 : index
    %86 = vector.load %arg9[%c0_23, %c0_24, %c0_25] : memref<1x32x32xbf16, #tpu.memory_space<vmem>>, vector<1x32x32xbf16>
    %87 = vector.shape_cast %86 : vector<1x32x32xbf16> to vector<32x32xbf16>
    %cst_26 = arith.constant dense<0.000000e+00> : vector<16x32xf32>
    %88 = tpu.matmul %85, %87, %cst_26 {dimension_numbers = #tpu.dot_dimension_numbers<[1], [0], [0], [1], [0, 0, 1, 1], [], []>} : vector<16x32xbf16>, vector<32x32xbf16>, vector<16x32xf32> -> vector<16x32xf32>
    %c0_27 = arith.constant 0 : index
    %c0_28 = arith.constant 0 : index
    %c0_29 = arith.constant 0 : index
    %89 = vector.load %arg10[%c0_27, %c0_28, %c0_29] : memref<1x1x32xf32, #tpu.memory_space<vmem>>, vector<1x1x32xf32>
    %90 = vector.shape_cast %89 : vector<1x1x32xf32> to vector<1x32xf32>
    %91 = vector.broadcast %90 : vector<1x32xf32> to vector<16x32xf32>
    %92 = arith.addf %88, %91 : vector<16x32xf32>
    %93 = arith.addf %3, %92 : vector<16x32xf32>
    %c0_30 = arith.constant 0 : index
    %c0_31 = arith.constant 0 : index
    %c0_32 = arith.constant 0 : index
    %94 = vector.load %arg11[%c0_30, %c0_31, %c0_32] : memref<1x1x32xf32, #tpu.memory_space<vmem>>, vector<1x1x32xf32>
    %95 = vector.shape_cast %94 : vector<1x1x32xf32> to vector<1x32xf32>
    %c0_33 = arith.constant 0 : index
    %c0_34 = arith.constant 0 : index
    %c0_35 = arith.constant 0 : index
    %96 = vector.load %arg12[%c0_33, %c0_34, %c0_35] : memref<1x1x32xf32, #tpu.memory_space<vmem>>, vector<1x1x32xf32>
    %97 = vector.shape_cast %96 : vector<1x1x32xf32> to vector<1x32xf32>
    %cst_36 = arith.constant dense<0.000000e+00> : vector<16xf32>
    %98 = vector.multi_reduction <add>, %93, %cst_36 [1] : vector<16x32xf32> to vector<16xf32>
    %99 = vector.shape_cast %98 : vector<16xf32> to vector<16x1xf32>
    %cst_37 = arith.constant 3.200000e+01 : f32
    %100 = vector.broadcast %cst_37 : f32 to vector<16x1xf32>
    %101 = arith.divf %99, %100 : vector<16x1xf32>
    %102 = vector.broadcast %101 : vector<16x1xf32> to vector<16x32xf32>
    %103 = arith.subf %93, %102 : vector<16x32xf32>
    %104 = arith.mulf %103, %103 : vector<16x32xf32>
    %cst_38 = arith.constant dense<0.000000e+00> : vector<16xf32>
    %105 = vector.multi_reduction <add>, %104, %cst_38 [1] : vector<16x32xf32> to vector<16xf32>
    %106 = vector.shape_cast %105 : vector<16xf32> to vector<16x1xf32>
    %cst_39 = arith.constant 3.200000e+01 : f32
    %107 = vector.broadcast %cst_39 : f32 to vector<16x1xf32>
    %108 = arith.divf %106, %107 : vector<16x1xf32>
    %109 = vector.broadcast %101 : vector<16x1xf32> to vector<16x32xf32>
    %110 = arith.subf %93, %109 : vector<16x32xf32>
    %cst_40 = arith.constant 9.99999974E-6 : f32
    %111 = vector.broadcast %cst_40 : f32 to vector<16x1xf32>
    %112 = arith.addf %108, %111 : vector<16x1xf32>
    %113 = math.rsqrt %112 : vector<16x1xf32>
    %114 = vector.broadcast %113 : vector<16x1xf32> to vector<16x32xf32>
    %115 = arith.mulf %110, %114 : vector<16x32xf32>
    %116 = vector.broadcast %95 : vector<1x32xf32> to vector<16x32xf32>
    %117 = arith.mulf %115, %116 : vector<16x32xf32>
    %118 = vector.broadcast %97 : vector<1x32xf32> to vector<16x32xf32>
    %119 = arith.addf %117, %118 : vector<16x32xf32>
    %120 = arith.truncf %119 : vector<16x32xf32> to vector<16x32xbf16>
    %c0_41 = arith.constant 0 : index
    %c0_42 = arith.constant 0 : index
    %c0_43 = arith.constant 0 : index
    %121 = vector.load %arg13[%c0_41, %c0_42, %c0_43] : memref<1x32x128xbf16, #tpu.memory_space<vmem>>, vector<1x32x128xbf16>
    %122 = vector.shape_cast %121 : vector<1x32x128xbf16> to vector<32x128xbf16>
    %cst_44 = arith.constant dense<0.000000e+00> : vector<16x128xf32>
    %123 = tpu.matmul %120, %122, %cst_44 {dimension_numbers = #tpu.dot_dimension_numbers<[1], [0], [0], [1], [0, 0, 1, 1], [], []>} : vector<16x32xbf16>, vector<32x128xbf16>, vector<16x128xf32> -> vector<16x128xf32>
    %c0_45 = arith.constant 0 : index
    %c0_46 = arith.constant 0 : index
    %c0_47 = arith.constant 0 : index
    %124 = vector.load %arg14[%c0_45, %c0_46, %c0_47] : memref<1x1x128xf32, #tpu.memory_space<vmem>>, vector<1x1x128xf32>
    %125 = vector.shape_cast %124 : vector<1x1x128xf32> to vector<1x128xf32>
    %126 = vector.broadcast %125 : vector<1x128xf32> to vector<16x128xf32>
    %127 = arith.addf %123, %126 : vector<16x128xf32>
    %128 = arith.mulf %127, %127 : vector<16x128xf32>
    %129 = arith.mulf %127, %128 : vector<16x128xf32>
    %cst_48 = arith.constant 4.471500e-02 : f32
    %130 = vector.broadcast %cst_48 : f32 to vector<16x128xf32>
    %131 = arith.mulf %130, %129 : vector<16x128xf32>
    %132 = arith.addf %127, %131 : vector<16x128xf32>
    %cst_49 = arith.constant 0.797884583 : f32
    %133 = vector.broadcast %cst_49 : f32 to vector<16x128xf32>
    %134 = arith.mulf %133, %132 : vector<16x128xf32>
    %135 = math.tanh %134 : vector<16x128xf32>
    %cst_50 = arith.constant 1.000000e+00 : f32
    %136 = vector.broadcast %cst_50 : f32 to vector<16x128xf32>
    %137 = arith.addf %136, %135 : vector<16x128xf32>
    %cst_51 = arith.constant 5.000000e-01 : f32
    %138 = vector.broadcast %cst_51 : f32 to vector<16x128xf32>
    %139 = arith.mulf %138, %137 : vector<16x128xf32>
    %140 = arith.mulf %127, %139 : vector<16x128xf32>
    %141 = arith.truncf %140 : vector<16x128xf32> to vector<16x128xbf16>
    %c0_52 = arith.constant 0 : index
    %c0_53 = arith.constant 0 : index
    %c0_54 = arith.constant 0 : index
    %142 = vector.load %arg15[%c0_52, %c0_53, %c0_54] : memref<1x128x32xbf16, #tpu.memory_space<vmem>>, vector<1x128x32xbf16>
    %143 = vector.shape_cast %142 : vector<1x128x32xbf16> to vector<128x32xbf16>
    %cst_55 = arith.constant dense<0.000000e+00> : vector<16x32xf32>
    %144 = tpu.matmul %141, %143, %cst_55 {dimension_numbers = #tpu.dot_dimension_numbers<[1], [0], [0], [1], [0, 0, 1, 1], [], []>} : vector<16x128xbf16>, vector<128x32xbf16>, vector<16x32xf32> -> vector<16x32xf32>
    %c0_56 = arith.constant 0 : index
    %c0_57 = arith.constant 0 : index
    %c0_58 = arith.constant 0 : index
    %145 = vector.load %arg16[%c0_56, %c0_57, %c0_58] : memref<1x1x32xf32, #tpu.memory_space<vmem>>, vector<1x1x32xf32>
    %146 = vector.shape_cast %145 : vector<1x1x32xf32> to vector<1x32xf32>
    %147 = vector.broadcast %146 : vector<1x32xf32> to vector<16x32xf32>
    %148 = arith.addf %144, %147 : vector<16x32xf32>
    %149 = arith.addf %93, %148 : vector<16x32xf32>
    %c0_59 = arith.constant 0 : index
    %c0_60 = arith.constant 0 : index
    %150 = vector.load %arg18[%c0_59, %c0_60] : memref<16x32xf32, #tpu.memory_space<vmem>>, vector<16x32xf32>
    tpu.vector_store %arg18[%c0_59, %c0_60], %149 {strides = array<i32>} : memref<16x32xf32, #tpu.memory_space<vmem>>, vector<16x32xf32>,
    %c1_i32 = arith.constant 1 : i32
    %151 = arith.cmpi eq, %arg1, %c1_i32 : i32
    %152 = arith.extui %151 : i1 to i32
    %c0_i32_61 = arith.constant 0 : i32
    %153 = arith.cmpi ne, %152, %c0_i32_61 : i32
    scf.if %153 {
      %154 = vector.shape_cast %149 : vector<16x32xf32> to vector<2x8x32xf32>
      %c0_62 = arith.constant 0 : index
      %c0_63 = arith.constant 0 : index
      %c0_64 = arith.constant 0 : index
      %155 = vector.load %arg17[%c0_62, %c0_63, %c0_64] : memref<2x8x32xf32, #tpu.memory_space<vmem>>, vector<2x8x32xf32>
      tpu.vector_store %arg17[%c0_62, %c0_63, %c0_64], %154 {strides = array<i32>} : memref<2x8x32xf32, #tpu.memory_space<vmem>>, vector<2x8x32xf32>,
    } else {
    }
    return
  }
  func.func @transform_0(%arg0: i32, %arg1: i32) -> (i32, i32, i32) {
    %c0_i32 = arith.constant 0 : i32
    %c0_i32_0 = arith.constant 0 : i32
    %c0_i32_1 = arith.constant 0 : i32
    return %arg0, %c0_i32, %c0_i32_0 : i32, i32, i32
  }
  func.func @transform_1(%arg0: i32, %arg1: i32) -> (i32, i32) {
    %c0_i32 = arith.constant 0 : i32
    %c0_i32_0 = arith.constant 0 : i32
    %c0_i32_1 = arith.constant 0 : i32
    return %c0_i32, %c0_i32_0 : i32, i32
  }
  func.func @transform_2(%arg0: i32, %arg1: i32) -> (i32, i32) {
    %c0_i32 = arith.constant 0 : i32
    %c0_i32_0 = arith.constant 0 : i32
    %c0_i32_1 = arith.constant 0 : i32
    return %c0_i32, %c0_i32_0 : i32, i32
  }
  func.func @transform_3(%arg0: i32, %arg1: i32) -> (i32, i32, i32) {
    %c0_i32 = arith.constant 0 : i32
    %c0_i32_0 = arith.constant 0 : i32
    %c0_i32_1 = arith.constant 0 : i32
    return %arg1, %c0_i32, %c0_i32_0 : i32, i32, i32
  }
  func.func @transform_4(%arg0: i32, %arg1: i32) -> (i32, i32, i32) {
    %c0_i32 = arith.constant 0 : i32
    %c0_i32_0 = arith.constant 0 : i32
    %c0_i32_1 = arith.constant 0 : i32
    return %arg1, %c0_i32, %c0_i32_0 : i32, i32, i32
  }
  func.func @transform_5(%arg0: i32, %arg1: i32) -> (i32, i32, i32) {
    %c0_i32 = arith.constant 0 : i32
    %c0_i32_0 = arith.constant 0 : i32
    %c0_i32_1 = arith.constant 0 : i32
    return %arg1, %c0_i32, %c0_i32_0 : i32, i32, i32
  }
  func.func @transform_6(%arg0: i32, %arg1: i32) -> (i32, i32, i32) {
    %c0_i32 = arith.constant 0 : i32
    %c0_i32_0 = arith.constant 0 : i32
    %c0_i32_1 = arith.constant 0 : i32
    return %arg1, %c0_i32, %c0_i32_0 : i32, i32, i32
  }
  func.func @transform_7(%arg0: i32, %arg1: i32) -> (i32, i32, i32) {
    %c0_i32 = arith.constant 0 : i32
    %c0_i32_0 = arith.constant 0 : i32
    %c0_i32_1 = arith.constant 0 : i32
    return %arg1, %c0_i32, %c0_i32_0 : i32, i32, i32
  }
  func.func @transform_8(%arg0: i32, %arg1: i32) -> (i32, i32, i32) {
    %c0_i32 = arith.constant 0 : i32
    %c0_i32_0 = arith.constant 0 : i32
    %c0_i32_1 = arith.constant 0 : i32
    return %arg1, %c0_i32, %c0_i32_0 : i32, i32, i32
  }
  func.func @transform_9(%arg0: i32, %arg1: i32) -> (i32, i32, i32) {
    %c0_i32 = arith.constant 0 : i32
    %c0_i32_0 = arith.constant 0 : i32
    %c0_i32_1 = arith.constant 0 : i32
    return %arg1, %c0_i32, %c0_i32_0 : i32, i32, i32
  }
  func.func @transform_10(%arg0: i32, %arg1: i32) -> (i32, i32, i32) {
    %c0_i32 = arith.constant 0 : i32
    %c0_i32_0 = arith.constant 0 : i32
    %c0_i32_1 = arith.constant 0 : i32
    return %arg1, %c0_i32, %c0_i32_0 : i32, i32, i32
  }
  func.func @transform_11(%arg0: i32, %arg1: i32) -> (i32, i32, i32) {
    %c0_i32 = arith.constant 0 : i32
    %c0_i32_0 = arith.constant 0 : i32
    %c0_i32_1 = arith.constant 0 : i32
    return %arg1, %c0_i32, %c0_i32_0 : i32, i32, i32
  }
  func.func @transform_12(%arg0: i32, %arg1: i32) -> (i32, i32, i32) {
    %c0_i32 = arith.constant 0 : i32
    %c0_i32_0 = arith.constant 0 : i32
    %c0_i32_1 = arith.constant 0 : i32
    return %arg1, %c0_i32, %c0_i32_0 : i32, i32, i32
  }
  func.func @transform_13(%arg0: i32, %arg1: i32) -> (i32, i32, i32) {
    %c0_i32 = arith.constant 0 : i32
    %c0_i32_0 = arith.constant 0 : i32
    %c0_i32_1 = arith.constant 0 : i32
    return %arg1, %c0_i32, %c0_i32_0 : i32, i32, i32
  }
  func.func @transform_14(%arg0: i32, %arg1: i32) -> (i32, i32, i32) {
    %c0_i32 = arith.constant 0 : i32
    %c0_i32_0 = arith.constant 0 : i32
    %c0_i32_1 = arith.constant 0 : i32
    return %arg1, %c0_i32, %c0_i32_0 : i32, i32, i32
  }
  func.func @transform_15(%arg0: i32, %arg1: i32) -> (i32, i32, i32) {
    %c0_i32 = arith.constant 0 : i32
    %c0_i32_0 = arith.constant 0 : i32
    %c0_i32_1 = arith.constant 0 : i32
    return %arg0, %c0_i32, %c0_i32_0 : i32, i32, i32
  }
}

</mosaic_0001>

<llo_original>
// kernel: tpu_custom_call.1
$region0: #{tpu_custom_call.1}
  #allocation0 [shape = 'u32[]', space=smem, size = 0x4, offset = 0x4, fixed_abs, tag = 'smem constant byte address 0x4 - core index']
  #allocation1 [shape = 'u32[144,128]{1,0:T(1,128)}', space=vmem, size = 0x12000, scoped, tag = 'internal scratch']
  #allocation2 [shape = 'f32[16,32]{1,0:T(8,128)}', space=vmem, size = 0x2000, scoped, tag = 'scratch operand']
  %s0 = inlined_call_operand.vmem [shape: bf16[2,8,64], index: 0, kind: input, shape index: {}]
  %s1 = inlined_call_operand.vmem [shape: bf16[64,32], index: 1, kind: input, shape index: {}]
  %s2 = inlined_call_operand.vmem [shape: f32[1,32], index: 2, kind: input, shape index: {}]
  %s3 = inlined_call_operand.vmem [shape: f32[2,1,32], index: 3, kind: input, shape index: {}]
  %s4 = inlined_call_operand.vmem [shape: f32[2,1,32], index: 4, kind: input, shape index: {}]
  %s5 = inlined_call_operand.vmem [shape: bf16[2,32,96], index: 5, kind: input, shape index: {}]
  %s6 = inlined_call_operand.vmem [shape: f32[2,1,96], index: 6, kind: input, shape index: {}]
  %s7 = inlined_call_operand.vmem [shape: bf16[2,32,32], index: 7, kind: input, shape index: {}]
  %s8 = inlined_call_operand.vmem [shape: f32[2,1,32], index: 8, kind: input, shape index: {}]
  %s9 = inlined_call_operand.vmem [shape: f32[2,1,32], index: 9, kind: input, shape index: {}]
  %s10 = inlined_call_operand.vmem [shape: f32[2,1,32], index: 10, kind: input, shape index: {}]
  %s11 = inlined_call_operand.vmem [shape: bf16[2,32,128], index: 11, kind: input, shape index: {}]
  %s12 = inlined_call_operand.vmem [shape: f32[2,1,128], index: 12, kind: input, shape index: {}]
  %s13 = inlined_call_operand.vmem [shape: bf16[2,128,32], index: 13, kind: input, shape index: {}]
  %s14 = inlined_call_operand.vmem [shape: f32[2,1,32], index: 14, kind: input, shape index: {}]
  %s15 = inlined_call_operand.hbm [shape: f32[2,8,32], index: 15, kind: output, shape index: {}]
  %s16 = sld [smem:[#allocation0]]
  $region101: #{tpu_custom_call.1} parent=0
    _
  %s18 = ssub.s32 1, %s16
  %s19 = scalar_select 0, %s18, %s16
  $region1: #{tpu_custom_call.1} parent=0
    #allocation3 [shape = 'u8[8192]{0}', space=vmem, size = 0x2000, scoped, tag = 'output window, operand 0, single buffered']
    #allocation4 [shape = 's32[2]{0}', space=sflag, size = 0x8, scoped, tag = 'scoped memory for tpu_custom_call.1']
    %20 = vsyncpa [#allocation4], 0
    loop: start=0, step=1, limit=4
    $region2: #{tpu_custom_call.1} parent=1 // loop_pre_header
      _
    $region3: #{tpu_custom_call.1} parent=1 // loop_header
      %s22 = sphi 0, %s26
      %p23 = scmp.ge.s32.totalorder %s22, 4
      %s29 = sphi 0, %s41
      %s30 = sphi 0, %s37
      %s31 = sphi 0, %s29
      %s32 = sphi 0, %s30
      %s33 = sphi 0, %s31
      %s34 = sphi 0, %s32
      %s44 = sphi 0, %s46
      %s47 = sphi 0, %s44
      %s48 = sphi 0, %s47
      %s64 = sphi 0, %s48
      %s68 = sphi 0, %s68
      %s70 = sphi 0, %s68
      %s71 = sphi 0, %s70
      %s85 = sphi 0, %s71
      %s89 = sphi 0, %s89
      %s91 = sphi 0, %s89
      %s92 = sphi 0, %s91
      %s106 = sphi 0, %s92
      %s112 = sphi 0, %s114
      %s115 = sphi 0, %s112
      %s116 = sphi 0, %s115
      %s132 = sphi 0, %s116
      %s138 = sphi 0, %s140
      %s141 = sphi 0, %s138
      %s142 = sphi 0, %s141
      %s158 = sphi 0, %s142
      %s164 = sphi 0, %s166
      %s167 = sphi 0, %s164
      %s168 = sphi 0, %s167
      %s184 = sphi 0, %s168
      %s190 = sphi 0, %s192
      %s193 = sphi 0, %s190
      %s194 = sphi 0, %s193
      %s210 = sphi 0, %s194
      %s216 = sphi 0, %s218
      %s219 = sphi 0, %s216
      %s220 = sphi 0, %s219
      %s236 = sphi 0, %s220
      %s242 = sphi 0, %s244
      %s245 = sphi 0, %s242
      %s246 = sphi 0, %s245
      %s262 = sphi 0, %s246
      %s268 = sphi 0, %s270
      %s271 = sphi 0, %s268
      %s272 = sphi 0, %s271
      %s288 = sphi 0, %s272
      %s294 = sphi 0, %s296
      %s297 = sphi 0, %s294
      %s298 = sphi 0, %s297
      %s314 = sphi 0, %s298
      %s320 = sphi 0, %s322
      %s323 = sphi 0, %s320
      %s324 = sphi 0, %s323
      %s340 = sphi 0, %s324
      %s346 = sphi 0, %s348
      %s349 = sphi 0, %s346
      %s350 = sphi 0, %s349
      %s366 = sphi 0, %s350
      %s372 = sphi 0, %s374
      %s375 = sphi 0, %s372
      %s376 = sphi 0, %s375
      %s392 = sphi 0, %s376
      %s398 = sphi 0, %s400
      %s401 = sphi 0, %s398
      %s402 = sphi 0, %s401
      %s418 = sphi 0, %s402
      %s424 = sphi 0, %s426
      %s427 = sphi 0, %s424
      %s428 = sphi 0, %s427
      %s444 = sphi 0, %s428
    $region4: #{tpu_custom_call.1} parent=1 // loop_header_branch
      %25 = sbr.rel (%p23) target = $region8
    $region5: #{tpu_custom_call.1} parent=1 // loop_body
      %s27 = ssub.s32 %s22, 1
      %s28 = ssub.s32 %s22, 2
      %s35 = sadd.s32 1, %s30
      %p36 = scmp.ge.s32.totalorder %s35, 2
      %s37 = scalar_select %p36, 0, %s35
      %s38 = sadd.s32 1, %s29
      %s39 = scalar_select %p36, %s38, %s29
      %p40 = scmp.ge.s32.totalorder %s39, 1
      %s41 = scalar_select %p40, 0, %s39
      %s42 = ssub.s32 %s29, %s41
      %p43 = scmp.eq.s32.totalorder %s42, 0
      %s45 = sadd.s32 %s44, 1
      %s46 = scalar_select %p43, %s44, %s45
      %p49 = pneg %p43
      %p50 = scmp.eq.s32.totalorder %s22, 1
      %p51 = por %p49, %p50
      %p52 = scmp.ne.s32.totalorder %s44, %s47
      %p53 = scmp.eq.s32.totalorder %s22, 0
      %p54 = por %p52, %p53
      %p55 = scmp.ne.s32.totalorder %s44, %s47
      %p56 = scmp.eq.s32.totalorder %s27, 1
      %p57 = por %p55, %p56
      %p58 = scmp.ne.s32.totalorder %s47, %s48
      %p59 = scmp.eq.s32.totalorder %s27, 0
      %p60 = por %p58, %p59
      %p61 = scmp.ne.s32.totalorder %s47, %s48
      %p62 = scmp.eq.s32.totalorder %s28, 1
      %p63 = por %p61, %p62
      %p65 = scmp.ne.s32.totalorder %s48, %s64
      %p66 = scmp.eq.s32.totalorder %s28, 0
      %p67 = por %p65, %p66
      %s69 = sadd.s32 %s68, 1
      %p72 = scmp.eq.s32.totalorder %s22, 1
      %p73 = scmp.ne.s32.totalorder %s68, %s70
      %p74 = scmp.eq.s32.totalorder %s22, 0
      %p75 = por %p73, %p74
      %p76 = scmp.ne.s32.totalorder %s68, %s70
      %p77 = scmp.eq.s32.totalorder %s27, 1
      %p78 = por %p76, %p77
      %p79 = scmp.ne.s32.totalorder %s70, %s71
      %p80 = scmp.eq.s32.totalorder %s27, 0
      %p81 = por %p79, %p80
      %p82 = scmp.ne.s32.totalorder %s70, %s71
      %p83 = scmp.eq.s32.totalorder %s28, 1
      %p84 = por %p82, %p83
      %p86 = scmp.ne.s32.totalorder %s71, %s85
      %p87 = scmp.eq.s32.totalorder %s28, 0
      %p88 = por %p86, %p87
      %s90 = sadd.s32 %s89, 1
      %p93 = scmp.eq.s32.totalorder %s22, 1
      %p94 = scmp.ne.s32.totalorder %s89, %s91
      %p95 = scmp.eq.s32.totalorder %s22, 0
      %p96 = por %p94, %p95
      %p97 = scmp.ne.s32.totalorder %s89, %s91
      %p98 = scmp.eq.s32.totalorder %s27, 1
      %p99 = por %p97, %p98
      %p100 = scmp.ne.s32.totalorder %s91, %s92
      %p101 = scmp.eq.s32.totalorder %s27, 0
      %p102 = por %p100, %p101
      %p103 = scmp.ne.s32.totalorder %s91, %s92
      %p104 = scmp.eq.s32.totalorder %s28, 1
      %p105 = por %p103, %p104
      %p107 = scmp.ne.s32.totalorder %s92, %s106
      %p108 = scmp.eq.s32.totalorder %s28, 0
      %p109 = por %p107, %p108
      %s110 = ssub.s32 %s30, %s37
      %p111 = scmp.eq.s32.totalorder %s110, 0
      %s113 = sadd.s32 %s112, 1
      %s114 = scalar_select %p111, %s112, %s113
      %p117 = pneg %p111
      %p118 = scmp.eq.s32.totalorder %s22, 1
      %p119 = por %p117, %p118
      %p120 = scmp.ne.s32.totalorder %s112, %s115
      %p121 = scmp.eq.s32.totalorder %s22, 0
      %p122 = por %p120, %p121
      %p123 = scmp.ne.s32.totalorder %s112, %s115
      %p124 = scmp.eq.s32.totalorder %s27, 1
      %p125 = por %p123, %p124
      %p126 = scmp.ne.s32.totalorder %s115, %s116
      %p127 = scmp.eq.s32.totalorder %s27, 0
      %p128 = por %p126, %p127
      %p129 = scmp.ne.s32.totalorder %s115, %s116
      %p130 = scmp.eq.s32.totalorder %s28, 1
      %p131 = por %p129, %p130
      %p133 = scmp.ne.s32.totalorder %s116, %s132
      %p134 = scmp.eq.s32.totalorder %s28, 0
      %p135 = por %p133, %p134
      %s136 = ssub.s32 %s30, %s37
      %p137 = scmp.eq.s32.totalorder %s136, 0
      %s139 = sadd.s32 %s138, 1
      %s140 = scalar_select %p137, %s138, %s139
      %p143 = pneg %p137
      %p144 = scmp.eq.s32.totalorder %s22, 1
      %p145 = por %p143, %p144
      %p146 = scmp.ne.s32.totalorder %s138, %s141
      %p147 = scmp.eq.s32.totalorder %s22, 0
      %p148 = por %p146, %p147
      %p149 = scmp.ne.s32.totalorder %s138, %s141
      %p150 = scmp.eq.s32.totalorder %s27, 1
      %p151 = por %p149, %p150
      %p152 = scmp.ne.s32.totalorder %s141, %s142
      %p153 = scmp.eq.s32.totalorder %s27, 0
      %p154 = por %p152, %p153
      %p155 = scmp.ne.s32.totalorder %s141, %s142
      %p156 = scmp.eq.s32.totalorder %s28, 1
      %p157 = por %p155, %p156
      %p159 = scmp.ne.s32.totalorder %s142, %s158
      %p160 = scmp.eq.s32.totalorder %s28, 0
      %p161 = por %p159, %p160
      %s162 = ssub.s32 %s30, %s37
      %p163 = scmp.eq.s32.totalorder %s162, 0
      %s165 = sadd.s32 %s164, 1
      %s166 = scalar_select %p163, %s164, %s165
      %p169 = pneg %p163
      %p170 = scmp.eq.s32.totalorder %s22, 1
      %p171 = por %p169, %p170
      %p172 = scmp.ne.s32.totalorder %s164, %s167
      %p173 = scmp.eq.s32.totalorder %s22, 0
      %p174 = por %p172, %p173
      %p175 = scmp.ne.s32.totalorder %s164, %s167
      %p176 = scmp.eq.s32.totalorder %s27, 1
      %p177 = por %p175, %p176
      %p178 = scmp.ne.s32.totalorder %s167, %s168
      %p179 = scmp.eq.s32.totalorder %s27, 0
      %p180 = por %p178, %p179
      %p181 = scmp.ne.s32.totalorder %s167, %s168
      %p182 = scmp.eq.s32.totalorder %s28, 1
      %p183 = por %p181, %p182
      %p185 = scmp.ne.s32.totalorder %s168, %s184
      %p186 = scmp.eq.s32.totalorder %s28, 0
      %p187 = por %p185, %p186
      %s188 = ssub.s32 %s30, %s37
      %p189 = scmp.eq.s32.totalorder %s188, 0
      %s191 = sadd.s32 %s190, 1
      %s192 = scalar_select %p189, %s190, %s191
      %p195 = pneg %p189
      %p196 = scmp.eq.s32.totalorder %s22, 1
      %p197 = por %p195, %p196
      %p198 = scmp.ne.s32.totalorder %s190, %s193
      %p199 = scmp.eq.s32.totalorder %s22, 0
      %p200 = por %p198, %p199
      %p201 = scmp.ne.s32.totalorder %s190, %s193
      %p202 = scmp.eq.s32.totalorder %s27, 1
      %p203 = por %p201, %p202
      %p204 = scmp.ne.s32.totalorder %s193, %s194
      %p205 = scmp.eq.s32.totalorder %s27, 0
      %p206 = por %p204, %p205
      %p207 = scmp.ne.s32.totalorder %s193, %s194
      %p208 = scmp.eq.s32.totalorder %s28, 1
      %p209 = por %p207, %p208
      %p211 = scmp.ne.s32.totalorder %s194, %s210
      %p212 = scmp.eq.s32.totalorder %s28, 0
      %p213 = por %p211, %p212
      %s214 = ssub.s32 %s30, %s37
      %p215 = scmp.eq.s32.totalorder %s214, 0
      %s217 = sadd.s32 %s216, 1
      %s218 = scalar_select %p215, %s216, %s217
      %p221 = pneg %p215
      %p222 = scmp.eq.s32.totalorder %s22, 1
      %p223 = por %p221, %p222
      %p224 = scmp.ne.s32.totalorder %s216, %s219
      %p225 = scmp.eq.s32.totalorder %s22, 0
      %p226 = por %p224, %p225
      %p227 = scmp.ne.s32.totalorder %s216, %s219
      %p228 = scmp.eq.s32.totalorder %s27, 1
      %p229 = por %p227, %p228
      %p230 = scmp.ne.s32.totalorder %s219, %s220
      %p231 = scmp.eq.s32.totalorder %s27, 0
      %p232 = por %p230, %p231
      %p233 = scmp.ne.s32.totalorder %s219, %s220
      %p234 = scmp.eq.s32.totalorder %s28, 1
      %p235 = por %p233, %p234
      %p237 = scmp.ne.s32.totalorder %s220, %s236
      %p238 = scmp.eq.s32.totalorder %s28, 0
      %p239 = por %p237, %p238
      %s240 = ssub.s32 %s30, %s37
      %p241 = scmp.eq.s32.totalorder %s240, 0
      %s243 = sadd.s32 %s242, 1
      %s244 = scalar_select %p241, %s242, %s243
      %p247 = pneg %p241
      %p248 = scmp.eq.s32.totalorder %s22, 1
      %p249 = por %p247, %p248
      %p250 = scmp.ne.s32.totalorder %s242, %s245
      %p251 = scmp.eq.s32.totalorder %s22, 0
      %p252 = por %p250, %p251
      %p253 = scmp.ne.s32.totalorder %s242, %s245
      %p254 = scmp.eq.s32.totalorder %s27, 1
      %p255 = por %p253, %p254
      %p256 = scmp.ne.s32.totalorder %s245, %s246
      %p257 = scmp.eq.s32.totalorder %s27, 0
      %p258 = por %p256, %p257
      %p259 = scmp.ne.s32.totalorder %s245, %s246
      %p260 = scmp.eq.s32.totalorder %s28, 1
      %p261 = por %p259, %p260
      %p263 = scmp.ne.s32.totalorder %s246, %s262
      %p264 = scmp.eq.s32.totalorder %s28, 0
      %p265 = por %p263, %p264
      %s266 = ssub.s32 %s30, %s37
      %p267 = scmp.eq.s32.totalorder %s266, 0
      %s269 = sadd.s32 %s268, 1
      %s270 = scalar_select %p267, %s268, %s269
      %p273 = pneg %p267
      %p274 = scmp.eq.s32.totalorder %s22, 1
      %p275 = por %p273, %p274
      %p276 = scmp.ne.s32.totalorder %s268, %s271
      %p277 = scmp.eq.s32.totalorder %s22, 0
      %p278 = por %p276, %p277
      %p279 = scmp.ne.s32.totalorder %s268, %s271
      %p280 = scmp.eq.s32.totalorder %s27, 1
      %p281 = por %p279, %p280
      %p282 = scmp.ne.s32.totalorder %s271, %s272
      %p283 = scmp.eq.s32.totalorder %s27, 0
      %p284 = por %p282, %p283
      %p285 = scmp.ne.s32.totalorder %s271, %s272
      %p286 = scmp.eq.s32.totalorder %s28, 1
      %p287 = por %p285, %p286
      %p289 = scmp.ne.s32.totalorder %s272, %s288
      %p290 = scmp.eq.s32.totalorder %s28, 0
      %p291 = por %p289, %p290
      %s292 = ssub.s32 %s30, %s37
      %p293 = scmp.eq.s32.totalorder %s292, 0
      %s295 = sadd.s32 %s294, 1
      %s296 = scalar_select %p293, %s294, %s295
      %p299 = pneg %p293
      %p300 = scmp.eq.s32.totalorder %s22, 1
      %p301 = por %p299, %p300
      %p302 = scmp.ne.s32.totalorder %s294, %s297
      %p303 = scmp.eq.s32.totalorder %s22, 0
      %p304 = por %p302, %p303
      %p305 = scmp.ne.s32.totalorder %s294, %s297
      %p306 = scmp.eq.s32.totalorder %s27, 1
      %p307 = por %p305, %p306
      %p308 = scmp.ne.s32.totalorder %s297, %s298
      %p309 = scmp.eq.s32.totalorder %s27, 0
      %p310 = por %p308, %p309
      %p311 = scmp.ne.s32.totalorder %s297, %s298
      %p312 = scmp.eq.s32.totalorder %s28, 1
      %p313 = por %p311, %p312
      %p315 = scmp.ne.s32.totalorder %s298, %s314
      %p316 = scmp.eq.s32.totalorder %s28, 0
      %p317 = por %p315, %p316
      %s318 = ssub.s32 %s30, %s37
      %p319 = scmp.eq.s32.totalorder %s318, 0
      %s321 = sadd.s32 %s320, 1
      %s322 = scalar_select %p319, %s320, %s321
      %p325 = pneg %p319
      %p326 = scmp.eq.s32.totalorder %s22, 1
      %p327 = por %p325, %p326
      %p328 = scmp.ne.s32.totalorder %s320, %s323
      %p329 = scmp.eq.s32.totalorder %s22, 0
      %p330 = por %p328, %p329
      %p331 = scmp.ne.s32.totalorder %s320, %s323
      %p332 = scmp.eq.s32.totalorder %s27, 1
      %p333 = por %p331, %p332
      %p334 = scmp.ne.s32.totalorder %s323, %s324
      %p335 = scmp.eq.s32.totalorder %s27, 0
      %p336 = por %p334, %p335
      %p337 = scmp.ne.s32.totalorder %s323, %s324
      %p338 = scmp.eq.s32.totalorder %s28, 1
      %p339 = por %p337, %p338
      %p341 = scmp.ne.s32.totalorder %s324, %s340
      %p342 = scmp.eq.s32.totalorder %s28, 0
      %p343 = por %p341, %p342
      %s344 = ssub.s32 %s30, %s37
      %p345 = scmp.eq.s32.totalorder %s344, 0
      %s347 = sadd.s32 %s346, 1
      %s348 = scalar_select %p345, %s346, %s347
      %p351 = pneg %p345
      %p352 = scmp.eq.s32.totalorder %s22, 1
      %p353 = por %p351, %p352
      %p354 = scmp.ne.s32.totalorder %s346, %s349
      %p355 = scmp.eq.s32.totalorder %s22, 0
      %p356 = por %p354, %p355
      %p357 = scmp.ne.s32.totalorder %s346, %s349
      %p358 = scmp.eq.s32.totalorder %s27, 1
      %p359 = por %p357, %p358
      %p360 = scmp.ne.s32.totalorder %s349, %s350
      %p361 = scmp.eq.s32.totalorder %s27, 0
      %p362 = por %p360, %p361
      %p363 = scmp.ne.s32.totalorder %s349, %s350
      %p364 = scmp.eq.s32.totalorder %s28, 1
      %p365 = por %p363, %p364
      %p367 = scmp.ne.s32.totalorder %s350, %s366
      %p368 = scmp.eq.s32.totalorder %s28, 0
      %p369 = por %p367, %p368
      %s370 = ssub.s32 %s30, %s37
      %p371 = scmp.eq.s32.totalorder %s370, 0
      %s373 = sadd.s32 %s372, 1
      %s374 = scalar_select %p371, %s372, %s373
      %p377 = pneg %p371
      %p378 = scmp.eq.s32.totalorder %s22, 1
      %p379 = por %p377, %p378
      %p380 = scmp.ne.s32.totalorder %s372, %s375
      %p381 = scmp.eq.s32.totalorder %s22, 0
      %p382 = por %p380, %p381
      %p383 = scmp.ne.s32.totalorder %s372, %s375
      %p384 = scmp.eq.s32.totalorder %s27, 1
      %p385 = por %p383, %p384
      %p386 = scmp.ne.s32.totalorder %s375, %s376
      %p387 = scmp.eq.s32.totalorder %s27, 0
      %p388 = por %p386, %p387
      %p389 = scmp.ne.s32.totalorder %s375, %s376
      %p390 = scmp.eq.s32.totalorder %s28, 1
      %p391 = por %p389, %p390
      %p393 = scmp.ne.s32.totalorder %s376, %s392
      %p394 = scmp.eq.s32.totalorder %s28, 0
      %p395 = por %p393, %p394
      %s396 = ssub.s32 %s30, %s37
      %p397 = scmp.eq.s32.totalorder %s396, 0
      %s399 = sadd.s32 %s398, 1
      %s400 = scalar_select %p397, %s398, %s399
      %p403 = pneg %p397
      %p404 = scmp.eq.s32.totalorder %s22, 1
      %p405 = por %p403, %p404
      %p406 = scmp.ne.s32.totalorder %s398, %s401
      %p407 = scmp.eq.s32.totalorder %s22, 0
      %p408 = por %p406, %p407
      %p409 = scmp.ne.s32.totalorder %s398, %s401
      %p410 = scmp.eq.s32.totalorder %s27, 1
      %p411 = por %p409, %p410
      %p412 = scmp.ne.s32.totalorder %s401, %s402
      %p413 = scmp.eq.s32.totalorder %s27, 0
      %p414 = por %p412, %p413
      %p415 = scmp.ne.s32.totalorder %s401, %s402
      %p416 = scmp.eq.s32.totalorder %s28, 1
      %p417 = por %p415, %p416
      %p419 = scmp.ne.s32.totalorder %s402, %s418
      %p420 = scmp.eq.s32.totalorder %s28, 0
      %p421 = por %p419, %p420
      %s422 = ssub.s32 %s29, %s41
      %p423 = scmp.eq.s32.totalorder %s422, 0
      %s425 = sadd.s32 %s424, 1
      %s426 = scalar_select %p423, %s424, %s425
      %p429 = pneg %p423
      %p430 = scmp.eq.s32.totalorder %s22, 1
      %p431 = por %p429, %p430
      %p432 = scmp.ne.s32.totalorder %s424, %s427
      %p433 = scmp.eq.s32.totalorder %s22, 0
      %p434 = por %p432, %p433
      %p435 = scmp.ne.s32.totalorder %s424, %s427
      %p436 = scmp.eq.s32.totalorder %s27, 1
      %p437 = por %p435, %p436
      %p438 = scmp.ne.s32.totalorder %s427, %s428
      %p439 = scmp.eq.s32.totalorder %s27, 0
      %p440 = por %p438, %p439
      %p441 = scmp.ne.s32.totalorder %s427, %s428
      %p442 = scmp.eq.s32.totalorder %s28, 1
      %p443 = por %p441, %p442
      %p445 = scmp.ne.s32.totalorder %s428, %s444
      %p446 = scmp.eq.s32.totalorder %s28, 0
      %p447 = por %p445, %p446
      %p448 = scmp.le.s32.totalorder 1, %s22
      %p449 = scmp.lt.s32.totalorder %s22, 3
      %p450 = pnand %p448, %p449
      %p451 = pneg %p450
      // Predicated region
      $region9: #{tpu_custom_call.1} parent=5 // pred_check
        _
      $region10: #{tpu_custom_call.1} parent=5 // pred_check_branch
        %453 = sbr.rel (%p450) target = $region12
      $region11: #{tpu_custom_call.1} parent=5 // pred_region
        %s454 = ssub.s32 %s22, 1
        // Predicated region
        $region13: #{tpu_custom_call.1} parent=11 // pred_check
          %p455 = pneg %p60
        $region14: #{tpu_custom_call.1} parent=11 // pred_check_branch
          %457 = sbr.rel (%p455) target = $region16
        $region15: #{tpu_custom_call.1} parent=11 // pred_region
          %s458 = smul.u32 2, %s31
          %p459 = scmp.lt.s32.totalorder %s458, 1
          %s460 = scalar_select %p459, %s458, 1
          %s461 = smul.addr %s460, 4
          %s462 = scalar_lea.vmem %s0, %s461
          %s463 = smul.u32 2, %s31
        $region16: #{tpu_custom_call.1} parent=11 // pred_fallthru
          _
        // Predicated region
        $region17: #{tpu_custom_call.1} parent=11 // pred_check
          %p464 = pneg %p81
        $region18: #{tpu_custom_call.1} parent=11 // pred_check_branch
          %466 = sbr.rel (%p464) target = $region20
        $region19: #{tpu_custom_call.1} parent=11 // pred_region
          _
        $region20: #{tpu_custom_call.1} parent=11 // pred_fallthru
          _
        // Predicated region
        $region21: #{tpu_custom_call.1} parent=11 // pred_check
          %p467 = pneg %p102
        $region22: #{tpu_custom_call.1} parent=11 // pred_check_branch
          %469 = sbr.rel (%p467) target = $region24
        $region23: #{tpu_custom_call.1} parent=11 // pred_region
          _
        $region24: #{tpu_custom_call.1} parent=11 // pred_fallthru
          _
      $region12: #{tpu_custom_call.1} parent=5 // pred_fallthru
        _
      %p470 = scmp.lt.s32.totalorder %s22, 2
      // Predicated region
      $region25: #{tpu_custom_call.1} parent=5 // pred_check
        %p471 = pneg %p470
      $region26: #{tpu_custom_call.1} parent=5 // pred_check_branch
        %473 = sbr.rel (%p471) target = $region28
      $region27: #{tpu_custom_call.1} parent=5 // pred_region
        // Predicated region
        $region29: #{tpu_custom_call.1} parent=27 // pred_check
          %p474 = pneg %p122
        $region30: #{tpu_custom_call.1} parent=27 // pred_check_branch
          %476 = sbr.rel (%p474) target = $region32
        $region31: #{tpu_custom_call.1} parent=27 // pred_region
          %p477 = scmp.lt.s32.totalorder %s30, 1
          %s478 = scalar_select %p477, %s30, 1
          %s479 = scalar_lea.vmem %s3, %s478
        $region32: #{tpu_custom_call.1} parent=27 // pred_fallthru
          _
        // Predicated region
        $region33: #{tpu_custom_call.1} parent=27 // pred_check
          %p480 = pneg %p148
        $region34: #{tpu_custom_call.1} parent=27 // pred_check_branch
          %482 = sbr.rel (%p480) target = $region36
        $region35: #{tpu_custom_call.1} parent=27 // pred_region
          %p483 = scmp.lt.s32.totalorder %s30, 1
          %s484 = scalar_select %p483, %s30, 1
          %s485 = scalar_lea.vmem %s4, %s484
        $region36: #{tpu_custom_call.1} parent=27 // pred_fallthru
          _
        // Predicated region
        $region37: #{tpu_custom_call.1} parent=27 // pred_check
          %p486 = pneg %p174
        $region38: #{tpu_custom_call.1} parent=27 // pred_check_branch
          %488 = sbr.rel (%p486) target = $region40
        $region39: #{tpu_custom_call.1} parent=27 // pred_region
          %p489 = scmp.lt.s32.totalorder %s30, 1
          %s490 = scalar_select %p489, %s30, 1
          %s491 = smul.addr %s490, 4
          %s492 = smul.addr %s491, 4
          %s493 = scalar_lea.vmem %s5, %s492
        $region40: #{tpu_custom_call.1} parent=27 // pred_fallthru
          _
        // Predicated region
        $region41: #{tpu_custom_call.1} parent=27 // pred_check
          %p494 = pneg %p200
        $region42: #{tpu_custom_call.1} parent=27 // pred_check_branch
          %496 = sbr.rel (%p494) target = $region44
        $region43: #{tpu_custom_call.1} parent=27 // pred_region
          %p497 = scmp.lt.s32.totalorder %s30, 1
          %s498 = scalar_select %p497, %s30, 1
          %s499 = scalar_lea.vmem %s6, %s498
        $region44: #{tpu_custom_call.1} parent=27 // pred_fallthru
          _
        // Predicated region
        $region45: #{tpu_custom_call.1} parent=27 // pred_check
          %p500 = pneg %p226
        $region46: #{tpu_custom_call.1} parent=27 // pred_check_branch
          %502 = sbr.rel (%p500) target = $region48
        $region47: #{tpu_custom_call.1} parent=27 // pred_region
          %p503 = scmp.lt.s32.totalorder %s30, 1
          %s504 = scalar_select %p503, %s30, 1
          %s505 = smul.addr %s504, 4
          %s506 = smul.addr %s505, 4
          %s507 = scalar_lea.vmem %s7, %s506
        $region48: #{tpu_custom_call.1} parent=27 // pred_fallthru
          _
        // Predicated region
        $region49: #{tpu_custom_call.1} parent=27 // pred_check
          %p508 = pneg %p252
        $region50: #{tpu_custom_call.1} parent=27 // pred_check_branch
          %510 = sbr.rel (%p508) target = $region52
        $region51: #{tpu_custom_call.1} parent=27 // pred_region
          %p511 = scmp.lt.s32.totalorder %s30, 1
          %s512 = scalar_select %p511, %s30, 1
          %s513 = scalar_lea.vmem %s8, %s512
        $region52: #{tpu_custom_call.1} parent=27 // pred_fallthru
          _
        // Predicated region
        $region53: #{tpu_custom_call.1} parent=27 // pred_check
          %p514 = pneg %p278
        $region54: #{tpu_custom_call.1} parent=27 // pred_check_branch
          %516 = sbr.rel (%p514) target = $region56
        $region55: #{tpu_custom_call.1} parent=27 // pred_region
          %p517 = scmp.lt.s32.totalorder %s30, 1
          %s518 = scalar_select %p517, %s30, 1
          %s519 = scalar_lea.vmem %s9, %s518
        $region56: #{tpu_custom_call.1} parent=27 // pred_fallthru
          _
        // Predicated region
        $region57: #{tpu_custom_call.1} parent=27 // pred_check
          %p520 = pneg %p304
        $region58: #{tpu_custom_call.1} parent=27 // pred_check_branch
          %522 = sbr.rel (%p520) target = $region60
        $region59: #{tpu_custom_call.1} parent=27 // pred_region
          %p523 = scmp.lt.s32.totalorder %s30, 1
          %s524 = scalar_select %p523, %s30, 1
          %s525 = scalar_lea.vmem %s10, %s524
        $region60: #{tpu_custom_call.1} parent=27 // pred_fallthru
          _
        // Predicated region
        $region61: #{tpu_custom_call.1} parent=27 // pred_check
          %p526 = pneg %p330
        $region62: #{tpu_custom_call.1} parent=27 // pred_check_branch
          %528 = sbr.rel (%p526) target = $region64
        $region63: #{tpu_custom_call.1} parent=27 // pred_region
          %p529 = scmp.lt.s32.totalorder %s30, 1
          %s530 = scalar_select %p529, %s30, 1
          %s531 = smul.addr %s530, 4
          %s532 = smul.addr %s531, 4
          %s533 = scalar_lea.vmem %s11, %s532
        $region64: #{tpu_custom_call.1} parent=27 // pred_fallthru
          _
        // Predicated region
        $region65: #{tpu_custom_call.1} parent=27 // pred_check
          %p534 = pneg %p356
        $region66: #{tpu_custom_call.1} parent=27 // pred_check_branch
          %536 = sbr.rel (%p534) target = $region68
        $region67: #{tpu_custom_call.1} parent=27 // pred_region
          %p537 = scmp.lt.s32.totalorder %s30, 1
          %s538 = scalar_select %p537, %s30, 1
          %s539 = scalar_lea.vmem %s12, %s538
        $region68: #{tpu_custom_call.1} parent=27 // pred_fallthru
          _
        // Predicated region
        $region69: #{tpu_custom_call.1} parent=27 // pred_check
          %p540 = pneg %p382
        $region70: #{tpu_custom_call.1} parent=27 // pred_check_branch
          %542 = sbr.rel (%p540) target = $region72
        $region71: #{tpu_custom_call.1} parent=27 // pred_region
          %p543 = scmp.lt.s32.totalorder %s30, 1
          %s544 = scalar_select %p543, %s30, 1
          %s545 = smul.addr %s544, 16
          %s546 = smul.addr %s545, 4
          %s547 = scalar_lea.vmem %s13, %s546
        $region72: #{tpu_custom_call.1} parent=27 // pred_fallthru
          _
        // Predicated region
        $region73: #{tpu_custom_call.1} parent=27 // pred_check
          %p548 = pneg %p408
        $region74: #{tpu_custom_call.1} parent=27 // pred_check_branch
          %550 = sbr.rel (%p548) target = $region76
        $region75: #{tpu_custom_call.1} parent=27 // pred_region
          %p551 = scmp.lt.s32.totalorder %s30, 1
          %s552 = scalar_select %p551, %s30, 1
          %s553 = scalar_lea.vmem %s14, %s552
        $region76: #{tpu_custom_call.1} parent=27 // pred_fallthru
          _
      $region28: #{tpu_custom_call.1} parent=5 // pred_fallthru
        _
      %p554 = scmp.le.s32.totalorder 1, %s22
      %p555 = scmp.lt.s32.totalorder %s22, 3
      %p556 = pnand %p554, %p555
      %p557 = pneg %p556
      // Predicated region
      $region77: #{tpu_custom_call.1} parent=5 // pred_check
        _
      $region78: #{tpu_custom_call.1} parent=5 // pred_check_branch
        %559 = sbr.rel (%p556) target = $region80
      $region79: #{tpu_custom_call.1} parent=5 // pred_region
        %s560 = ssub.s32 %s22, 1
        %s561 = smul.u32 2, %s31
        %p562 = scmp.lt.s32.totalorder %s561, 1
        %s563 = scalar_select %p562, %s561, 1
        %s564 = smul.addr %s563, 4
        %s565 = scalar_lea.vmem %s0, %s564
        %p566 = pneg %p60
        %p567 = pneg %p57
        %p568 = pneg %p81
        %p569 = pneg %p78
        %p570 = pneg %p102
        %p571 = pneg %p99
        %p572 = scmp.lt.s32.totalorder %s32, 1
        %s573 = scalar_select %p572, %s32, 1
        %s574 = scalar_lea.vmem %s3, %s573
        %p575 = pneg %p128
        %p576 = pneg %p125
        %p577 = scmp.lt.s32.totalorder %s32, 1
        %s578 = scalar_select %p577, %s32, 1
        %s579 = scalar_lea.vmem %s4, %s578
        %p580 = pneg %p154
        %p581 = pneg %p151
        %p582 = scmp.lt.s32.totalorder %s32, 1
        %s583 = scalar_select %p582, %s32, 1
        %s584 = smul.addr %s583, 4
        %s585 = smul.addr %s584, 4
        %s586 = scalar_lea.vmem %s5, %s585
        %p587 = pneg %p180
        %p588 = pneg %p177
        %p589 = scmp.lt.s32.totalorder %s32, 1
        %s590 = scalar_select %p589, %s32, 1
        %s591 = scalar_lea.vmem %s6, %s590
        %p592 = pneg %p206
        %p593 = pneg %p203
        %p594 = scmp.lt.s32.totalorder %s32, 1
        %s595 = scalar_select %p594, %s32, 1
        %s596 = smul.addr %s595, 4
        %s597 = smul.addr %s596, 4
        %s598 = scalar_lea.vmem %s7, %s597
        %p599 = pneg %p232
        %p600 = pneg %p229
        %p601 = scmp.lt.s32.totalorder %s32, 1
        %s602 = scalar_select %p601, %s32, 1
        %s603 = scalar_lea.vmem %s8, %s602
        %p604 = pneg %p258
        %p605 = pneg %p255
        %p606 = scmp.lt.s32.totalorder %s32, 1
        %s607 = scalar_select %p606, %s32, 1
        %s608 = scalar_lea.vmem %s9, %s607
        %p609 = pneg %p284
        %p610 = pneg %p281
        %p611 = scmp.lt.s32.totalorder %s32, 1
        %s612 = scalar_select %p611, %s32, 1
        %s613 = scalar_lea.vmem %s10, %s612
        %p614 = pneg %p310
        %p615 = pneg %p307
        %p616 = scmp.lt.s32.totalorder %s32, 1
        %s617 = scalar_select %p616, %s32, 1
        %s618 = smul.addr %s617, 4
        %s619 = smul.addr %s618, 4
        %s620 = scalar_lea.vmem %s11, %s619
        %p621 = pneg %p336
        %p622 = pneg %p333
        %p623 = scmp.lt.s32.totalorder %s32, 1
        %s624 = scalar_select %p623, %s32, 1
        %s625 = scalar_lea.vmem %s12, %s624
        %p626 = pneg %p362
        %p627 = pneg %p359
        %p628 = scmp.lt.s32.totalorder %s32, 1
        %s629 = scalar_select %p628, %s32, 1
        %s630 = smul.addr %s629, 16
        %s631 = smul.addr %s630, 4
        %s632 = scalar_lea.vmem %s13, %s631
        %p633 = pneg %p388
        %p634 = pneg %p385
        %p635 = scmp.lt.s32.totalorder %s32, 1
        %s636 = scalar_select %p635, %s32, 1
        %s637 = scalar_lea.vmem %s14, %s636
        %p638 = pneg %p414
        %p639 = pneg %p411
        %p640 = pneg %p440
        %p641 = pneg %p437
        %s642 = smul.u32 2, %s31
        %p643 = scmp.lt.s32.totalorder %s642, 1
        %s644 = scalar_select %p643, %s642, 1
        %s645 = smul.addr %s644, 4
        %s646 = scalar_lea.vmem %s0, %s645
        %s647 = smul.u32 2, %s31
        %p648 = scmp.lt.s32.totalorder %s32, 1
        %s649 = scalar_select %p648, %s32, 1
        %s650 = scalar_lea.vmem %s3, %s649
        %p651 = scmp.lt.s32.totalorder %s32, 1
        %s652 = scalar_select %p651, %s32, 1
        %s653 = scalar_lea.vmem %s4, %s652
        %p654 = scmp.lt.s32.totalorder %s32, 1
        %s655 = scalar_select %p654, %s32, 1
        %s656 = smul.addr %s655, 4
        %s657 = smul.addr %s656, 4
        %s658 = scalar_lea.vmem %s5, %s657
        %p659 = scmp.lt.s32.totalorder %s32, 1
        %s660 = scalar_select %p659, %s32, 1
        %s661 = scalar_lea.vmem %s6, %s660
        %p662 = scmp.lt.s32.totalorder %s32, 1
        %s663 = scalar_select %p662, %s32, 1
        %s664 = smul.addr %s663, 4
        %s665 = smul.addr %s664, 4
        %s666 = scalar_lea.vmem %s7, %s665
        %p667 = scmp.lt.s32.totalorder %s32, 1
        %s668 = scalar_select %p667, %s32, 1
        %s669 = scalar_lea.vmem %s8, %s668
        %p670 = scmp.lt.s32.totalorder %s32, 1
        %s671 = scalar_select %p670, %s32, 1
        %s672 = scalar_lea.vmem %s9, %s671
        %p673 = scmp.lt.s32.totalorder %s32, 1
        %s674 = scalar_select %p673, %s32, 1
        %s675 = scalar_lea.vmem %s10, %s674
        %p676 = scmp.lt.s32.totalorder %s32, 1
        %s677 = scalar_select %p676, %s32, 1
        %s678 = smul.addr %s677, 4
        %s679 = smul.addr %s678, 4
        %s680 = scalar_lea.vmem %s11, %s679
        %p681 = scmp.lt.s32.totalorder %s32, 1
        %s682 = scalar_select %p681, %s32, 1
        %s683 = scalar_lea.vmem %s12, %s682
        %p684 = scmp.lt.s32.totalorder %s32, 1
        %s685 = scalar_select %p684, %s32, 1
        %s686 = smul.addr %s685, 16
        %s687 = smul.addr %s686, 4
        %s688 = scalar_lea.vmem %s13, %s687
        %p689 = scmp.lt.s32.totalorder %s32, 1
        %s690 = scalar_select %p689, %s32, 1
        %s691 = scalar_lea.vmem %s14, %s690
        %s692 = smul.u32 2, %s31
        %p694 = scmp.eq.s32.totalorder %s32, 0
        // Predicated region
        $region81: #{tpu_custom_call.1} parent=79 // pred_check
          %p695 = pneg %p694
        $region82: #{tpu_custom_call.1} parent=79 // pred_check_branch
          %697 = sbr.rel (%p695) target = $region84
        $region83: #{tpu_custom_call.1} parent=79 // pred_region
          %v698 = vld [vmem:[%s646] sm:$0xf]
          %v699 = vld [vmem:[%s646 + $0x4] sm:$0xf]
          %v700 = vld [vmem:[%s1] sm:$0xf]
          %v701 = vld [vmem:[%s1 + $0x4] sm:$0xf]
          %v702 = vld [vmem:[%s1 + $0x8] sm:$0xf]
          %v703 = vld [vmem:[%s1 + $0xc] sm:$0xf]
          %v704 = vld [vmem:[%s1 + $0x10] sm:$0xf]
          %v705 = vld [vmem:[%s1 + $0x14] sm:$0xf]
          %v706 = vld [vmem:[%s1 + $0x18] sm:$0xf]
          %v707 = vld [vmem:[%s1 + $0x1c] sm:$0xf]
          %v708 = vld [vmem:[%s2] sm:$0x1]
          %v710 = vlaneseq
          %v711 = vshrl.u32 %v710, 7
          %v712 = vsub.s32 0, %v711
          %v713 = vrot.slane %v708, %v712
          %v717 = vunpack.c.l.b16 %v698
          %v718 = vunpack.c.l.b16 %v699
          %v719 = vpack.c.b16 %v718, %v717
          %v728 = vunpack.c.l.b16 %v700
          %v729 = vunpack.c.l.b16 %v701
          %v730 = vunpack.c.l.b16 %v702
          %v731 = vunpack.c.l.b16 %v703
          %v732 = vunpack.c.l.b16 %v704
          %v733 = vunpack.c.l.b16 %v705
          %v734 = vunpack.c.l.b16 %v706
          %v735 = vunpack.c.l.b16 %v707
          %v736 = vpack.c.b16 %v729, %v728
          %v737 = vpack.c.b16 %v731, %v730
          %v738 = vpack.c.b16 %v733, %v732
          %v739 = vpack.c.b16 %v735, %v734
          %vm744 = vcmask 523264
          %v746 = vsel %vm744, %v719, 0
          %748 = vmatprep.subr.bf16.mxu0 0
          %749 = vmatpush1.bf16.msra.mxu0 %v736
          %750 = vmatprep.subr.bf16.mxu0 0
          %751 = vmatpush1.bf16.msra.mxu0 %v737
          %752 = vmatprep.subr.bf16.mxu0 0
          %753 = vmatpush1.bf16.msra.mxu0 %v738
          %754 = vmatprep.subr.bf16.mxu0 0
          %755 = vmatpush1.bf16.msra.mxu0 %v739
          %756 = vmatprep.subr.bf16.mxu0 0
          %757 = vmatpush1.bf16.msra.mxu0 0
          %758 = vmatprep.subr.bf16.mxu0 0
          %759 = vmatpush1.bf16.msra.mxu0 0
          %760 = vmatprep.subr.bf16.mxu0 0
          %761 = vmatpush1.bf16.msra.mxu0 0
          %762 = vmatprep.subr.bf16.mxu0 0
          %763 = vmatpush1.bf16.msra.mxu0 0
          %764 = vmatprep.subr.bf16.mxu0 0
          %765 = vmatpush1.bf16.msra.mxu0 0
          %766 = vmatprep.subr.bf16.mxu0 0
          %767 = vmatpush1.bf16.msra.mxu0 0
          %768 = vmatprep.subr.bf16.mxu0 0
          %769 = vmatpush1.bf16.msra.mxu0 0
          %770 = vmatprep.subr.bf16.mxu0 0
          %771 = vmatpush1.bf16.msra.mxu0 0
          %772 = vmatprep.subr.bf16.mxu0 0
          %773 = vmatpush1.bf16.msra.mxu0 0
          %774 = vmatprep.subr.bf16.mxu0 0
          %775 = vmatpush1.bf16.msra.mxu0 0
          %776 = vmatprep.subr.bf16.mxu0 0
          %777 = vmatpush1.bf16.msra.mxu0 0
          %778 = vmatprep.subr.bf16.mxu0 0
          %779 = vmatpush1.bf16.msra.mxu0 0
          %780 = vmatprep.mubr.bf16.mxu0 0
          %781 = vmatmul.mubr.bf16.gmra.mrb[0].mxu0 %v746
          %v782 = vpop.f32.mrb[0].mxu0
          %v783 = vadd.f32 %v713, %v782
          %v784 = vpop.f32.mrb[0].mxu0
          %v785 = vpop.f32.mrb[0].mxu0
          %v786 = vadd.f32 %v713, %v785
          %v787 = vpop.f32.mrb[0].mxu0
          %788 = vdwg.mxu0
          %vm789 = vcmask 261120
          %790 = vst.msk [vmem:[#allocation2] sm:$0xff] %vm789, %v783
          %791 = vst.msk [vmem:[#allocation2 + $0x8] sm:$0xff] %vm789, %v786
        $region84: #{tpu_custom_call.1} parent=79 // pred_fallthru
          _
        %v792 = vld [vmem:[#allocation2] sm:$0xff]
        %v793 = vld [vmem:[#allocation2 + $0x8] sm:$0xff]
        %v794 = vld [vmem:[%s650] sm:$0x1]
        %v795 = vld [vmem:[%s653] sm:$0x1]
        %vm796 = vcmask 261120
        %v797 = vsel %vm796, %v792, 0.0
        %798 = vadd.xlane.f32.xlu0 %v797
        %v799 = vpop.xlane.xlu0 %798
        %v800 = vsel %vm796, %v793, 0.0
        %801 = vadd.xlane.f32.xlu0 %v800
        %v802 = vpop.xlane.xlu0 %801
        %v803 = vrcp.pop 32.0
        %v804 = vmul.f32 %v799, %v803
        %v805 = vmul.f32 %v802, %v803
        %v806 = vsub.f32 %v792, %v804
        %v807 = vsub.f32 %v793, %v805
        %v808 = vmul.f32 %v806, %v806
        %v809 = vmul.f32 %v807, %v807
        %v810 = vsel %vm796, %v808, 0.0
        %811 = vadd.xlane.f32.xlu0 %v810
        %v812 = vpop.xlane.xlu0 %811
        %v813 = vsel %vm796, %v809, 0.0
        %814 = vadd.xlane.f32.xlu0 %v813
        %v815 = vpop.xlane.xlu0 %814
        %v816 = vmul.f32 %v812, %v803
        %v817 = vmul.f32 %v815, %v803
        %v818 = vadd.f32 %v816, 1e-05
        %v819 = vadd.f32 %v817, 1e-05
        %v820 = vrsqrt.pop %v818
        %v821 = vrsqrt.pop %v819
        %v822 = vmul.f32 %v806, %v820
        %v823 = vmul.f32 %v807, %v821
        %v825 = vlaneseq
        %v826 = vshrl.u32 %v825, 7
        %v827 = vsub.s32 0, %v826
        %v828 = vrot.slane %v794, %v827
        %v830 = vmul.f32 %v822, %v828
        %v831 = vmul.f32 %v823, %v828
        %v833 = vlaneseq
        %v834 = vshrl.u32 %v833, 7
        %v835 = vsub.s32 0, %v834
        %v836 = vrot.slane %v795, %v835
        %v838 = vadd.f32 %v830, %v836
        %v839 = vadd.f32 %v831, %v836
        %v840 = vpack.c.bf16 %v839, %v838
        %v841 = vld [vmem:[%s658] sm:$0xf]
        %v842 = vld [vmem:[%s658 + $0x4] sm:$0xf]
        %v843 = vld [vmem:[%s658 + $0x8] sm:$0xf]
        %v844 = vld [vmem:[%s658 + $0xc] sm:$0xf]
        %v845 = vld [vmem:[%s661] sm:$0x1]
        %v847 = vlaneseq
        %v848 = vshrl.u32 %v847, 7
        %v849 = vsub.s32 0, %v848
        %v850 = vrot.slane %v845, %v849
        %v856 = vunpack.c.l.b16 %v841
        %v857 = vunpack.c.l.b16 %v842
        %v858 = vunpack.c.l.b16 %v843
        %v859 = vunpack.c.l.b16 %v844
        %v860 = vpack.c.b16 %v857, %v856
        %v861 = vpack.c.b16 %v859, %v858
        %v865 = vsel %vm796, %v840, 0
        %867 = vmatprep.subr.bf16.mxu0 0
        %868 = vmatpush1.bf16.msra.mxu0 %v860
        %869 = vmatprep.subr.bf16.mxu0 0
        %870 = vmatpush1.bf16.msra.mxu0 %v861
        %871 = vmatprep.subr.bf16.mxu0 0
        %872 = vmatpush1.bf16.msra.mxu0 0
        %873 = vmatprep.subr.bf16.mxu0 0
        %874 = vmatpush1.bf16.msra.mxu0 0
        %875 = vmatprep.subr.bf16.mxu0 0
        %876 = vmatpush1.bf16.msra.mxu0 0
        %877 = vmatprep.subr.bf16.mxu0 0
        %878 = vmatpush1.bf16.msra.mxu0 0
        %879 = vmatprep.subr.bf16.mxu0 0
        %880 = vmatpush1.bf16.msra.mxu0 0
        %881 = vmatprep.subr.bf16.mxu0 0
        %882 = vmatpush1.bf16.msra.mxu0 0
        %883 = vmatprep.subr.bf16.mxu0 0
        %884 = vmatpush1.bf16.msra.mxu0 0
        %885 = vmatprep.subr.bf16.mxu0 0
        %886 = vmatpush1.bf16.msra.mxu0 0
        %887 = vmatprep.subr.bf16.mxu0 0
        %888 = vmatpush1.bf16.msra.mxu0 0
        %889 = vmatprep.subr.bf16.mxu0 0
        %890 = vmatpush1.bf16.msra.mxu0 0
        %891 = vmatprep.subr.bf16.mxu0 0
        %892 = vmatpush1.bf16.msra.mxu0 0
        %893 = vmatprep.subr.bf16.mxu0 0
        %894 = vmatpush1.bf16.msra.mxu0 0
        %895 = vmatprep.subr.bf16.mxu0 0
        %896 = vmatpush1.bf16.msra.mxu0 0
        %897 = vmatprep.subr.bf16.mxu0 0
        %898 = vmatpush1.bf16.msra.mxu0 0
        %899 = vmatprep.mubr.bf16.mxu0 0
        %900 = vmatmul.mubr.bf16.gmra.mrb[0].mxu0 %v865
        %v901 = vpop.f32.mrb[0].mxu0
        %v902 = vadd.f32 %v850, %v901
        %v903 = vpop.f32.mrb[0].mxu0
        %v904 = vpop.f32.mrb[0].mxu0
        %v905 = vadd.f32 %v850, %v904
        %v906 = vpop.f32.mrb[0].mxu0
        %907 = vdwg.mxu0
        %v908 = vpack.c.bf16 %v905, %v902
        %909 = vxpose.xlu0.c.b16.start [1/8] %v908, 128
        %910 = vxpose.xlu0.c.b16.cont [2/8] 0, 128
        %911 = vxpose.xlu0.c.b16.cont [3/8] 0, 128
        %912 = vxpose.xlu0.c.b16.cont [4/8] 0, 128
        %913 = vxpose.xlu0.c.b16.cont [5/8] 0, 128
        %914 = vxpose.xlu0.c.b16.cont [6/8] 0, 128
        %915 = vxpose.xlu0.c.b16.cont [7/8] 0, 128
        %916 = vxpose.xlu0.c.b16.end [8/8] 0, 128
        %v917 = vpop.trf.xlu0
        %v918 = vpop.trf.xlu0
        %v919 = vpop.trf.xlu0
        %v920 = vpop.trf.xlu0
        %v921 = vpop.trf.xlu0
        %v922 = vpop.trf.xlu0
        %v923 = vpop.trf.xlu0
        %v924 = vpop.trf.xlu0
        %v927 = vunpack.c.l.b16 %v917
        %v928 = vunpack.c.h.b16 %v917
        %v929 = vunpack.c.l.b16 %v918
        %v930 = vunpack.c.h.b16 %v918
        %v931 = vpack.c.b16 %v927, %v927
        %v932 = vpack.c.b16 %v928, %v928
        %v933 = vpack.c.b16 %v929, %v929
        %v934 = vpack.c.b16 %v930, %v930
        %v940 = vrot.slane %v908, 4
        %942 = vxpose.xlu0.c.b16.start [1/8] %v940, 128
        %943 = vxpose.xlu0.c.b16.cont [2/8] 0, 128
        %944 = vxpose.xlu0.c.b16.cont [3/8] 0, 128
        %945 = vxpose.xlu0.c.b16.cont [4/8] 0, 128
        %946 = vxpose.xlu0.c.b16.cont [5/8] 0, 128
        %947 = vxpose.xlu0.c.b16.cont [6/8] 0, 128
        %948 = vxpose.xlu0.c.b16.cont [7/8] 0, 128
        %949 = vxpose.xlu0.c.b16.end [8/8] 0, 128
        %v950 = vpop.trf.xlu0
        %v951 = vpop.trf.xlu0
        %v952 = vpop.trf.xlu0
        %v953 = vpop.trf.xlu0
        %v954 = vpop.trf.xlu0
        %v955 = vpop.trf.xlu0
        %v956 = vpop.trf.xlu0
        %v957 = vpop.trf.xlu0
        %v960 = vunpack.c.l.b16 %v950
        %v961 = vunpack.c.h.b16 %v950
        %v962 = vunpack.c.l.b16 %v951
        %v963 = vunpack.c.h.b16 %v951
        %v964 = vpack.c.b16 %v960, %v960
        %v965 = vpack.c.b16 %v961, %v961
        %v966 = vpack.c.b16 %v962, %v962
        %v967 = vpack.c.b16 %v963, %v963
        %972 = vrot.lane.b32.xlu0 %v908, 96
        %v973 = vpop.permute.xlu0 %972
        %975 = vxpose.xlu0.c.b16.start [1/8] %v973, 128
        %976 = vxpose.xlu0.c.b16.cont [2/8] 0, 128
        %977 = vxpose.xlu0.c.b16.cont [3/8] 0, 128
        %978 = vxpose.xlu0.c.b16.cont [4/8] 0, 128
        %979 = vxpose.xlu0.c.b16.cont [5/8] 0, 128
        %980 = vxpose.xlu0.c.b16.cont [6/8] 0, 128
        %981 = vxpose.xlu0.c.b16.cont [7/8] 0, 128
        %982 = vxpose.xlu0.c.b16.end [8/8] 0, 128
        %v983 = vpop.trf.xlu0
        %v984 = vpop.trf.xlu0
        %v985 = vpop.trf.xlu0
        %v986 = vpop.trf.xlu0
        %v987 = vpop.trf.xlu0
        %v988 = vpop.trf.xlu0
        %v989 = vpop.trf.xlu0
        %v990 = vpop.trf.xlu0
        %v993 = vunpack.c.l.b16 %v983
        %v994 = vunpack.c.h.b16 %v983
        %v995 = vunpack.c.l.b16 %v984
        %v996 = vunpack.c.h.b16 %v984
        %v997 = vpack.c.b16 %v993, %v993
        %v998 = vpack.c.b16 %v994, %v994
        %v999 = vpack.c.b16 %v995, %v995
        %v1000 = vpack.c.b16 %v996, %v996
        %1001 = vrot.lane.b32.xlu0 %v940, 96
        %v1002 = vpop.permute.xlu0 %1001
        %1004 = vxpose.xlu0.c.b16.start [1/8] %v1002, 128
        %1005 = vxpose.xlu0.c.b16.cont [2/8] 0, 128
        %1006 = vxpose.xlu0.c.b16.cont [3/8] 0, 128
        %1007 = vxpose.xlu0.c.b16.cont [4/8] 0, 128
        %1008 = vxpose.xlu0.c.b16.cont [5/8] 0, 128
        %1009 = vxpose.xlu0.c.b16.cont [6/8] 0, 128
        %1010 = vxpose.xlu0.c.b16.cont [7/8] 0, 128
        %1011 = vxpose.xlu0.c.b16.end [8/8] 0, 128
        %v1012 = vpop.trf.xlu0
        %v1013 = vpop.trf.xlu0
        %v1014 = vpop.trf.xlu0
        %v1015 = vpop.trf.xlu0
        %v1016 = vpop.trf.xlu0
        %v1017 = vpop.trf.xlu0
        %v1018 = vpop.trf.xlu0
        %v1019 = vpop.trf.xlu0
        %v1022 = vunpack.c.l.b16 %v1012
        %v1023 = vunpack.c.h.b16 %v1012
        %v1024 = vunpack.c.l.b16 %v1013
        %v1025 = vunpack.c.h.b16 %v1013
        %v1026 = vpack.c.b16 %v1022, %v1022
        %v1027 = vpack.c.b16 %v1023, %v1023
        %v1028 = vpack.c.b16 %v1024, %v1024
        %v1029 = vpack.c.b16 %v1025, %v1025
        %1030 = vrot.lane.b32.xlu0 %v908, 64
        %v1031 = vpop.permute.xlu0 %1030
        %1033 = vxpose.xlu0.c.b16.start [1/8] %v1031, 128
        %1034 = vxpose.xlu0.c.b16.cont [2/8] 0, 128
        %1035 = vxpose.xlu0.c.b16.cont [3/8] 0, 128
        %1036 = vxpose.xlu0.c.b16.cont [4/8] 0, 128
        %1037 = vxpose.xlu0.c.b16.cont [5/8] 0, 128
        %1038 = vxpose.xlu0.c.b16.cont [6/8] 0, 128
        %1039 = vxpose.xlu0.c.b16.cont [7/8] 0, 128
        %1040 = vxpose.xlu0.c.b16.end [8/8] 0, 128
        %v1041 = vpop.trf.xlu0
        %v1042 = vpop.trf.xlu0
        %v1043 = vpop.trf.xlu0
        %v1044 = vpop.trf.xlu0
        %v1045 = vpop.trf.xlu0
        %v1046 = vpop.trf.xlu0
        %v1047 = vpop.trf.xlu0
        %v1048 = vpop.trf.xlu0
        %v1051 = vunpack.c.l.b16 %v1041
        %v1052 = vunpack.c.h.b16 %v1041
        %v1053 = vunpack.c.l.b16 %v1042
        %v1054 = vunpack.c.h.b16 %v1042
        %v1055 = vpack.c.b16 %v1051, %v1051
        %v1056 = vpack.c.b16 %v1052, %v1052
        %v1057 = vpack.c.b16 %v1053, %v1053
        %v1058 = vpack.c.b16 %v1054, %v1054
        %1059 = vrot.lane.b32.xlu0 %v940, 64
        %v1060 = vpop.permute.xlu0 %1059
        %1062 = vxpose.xlu0.c.b16.start [1/8] %v1060, 128
        %1063 = vxpose.xlu0.c.b16.cont [2/8] 0, 128
        %1064 = vxpose.xlu0.c.b16.cont [3/8] 0, 128
        %1065 = vxpose.xlu0.c.b16.cont [4/8] 0, 128
        %1066 = vxpose.xlu0.c.b16.cont [5/8] 0, 128
        %1067 = vxpose.xlu0.c.b16.cont [6/8] 0, 128
        %1068 = vxpose.xlu0.c.b16.cont [7/8] 0, 128
        %1069 = vxpose.xlu0.c.b16.end [8/8] 0, 128
        %v1070 = vpop.trf.xlu0
        %v1071 = vpop.trf.xlu0
        %v1072 = vpop.trf.xlu0
        %v1073 = vpop.trf.xlu0
        %v1074 = vpop.trf.xlu0
        %v1075 = vpop.trf.xlu0
        %v1076 = vpop.trf.xlu0
        %v1077 = vpop.trf.xlu0
        %v1080 = vunpack.c.l.b16 %v1070
        %v1081 = vunpack.c.h.b16 %v1070
        %v1082 = vunpack.c.l.b16 %v1071
        %v1083 = vunpack.c.h.b16 %v1071
        %v1084 = vpack.c.b16 %v1080, %v1080
        %v1085 = vpack.c.b16 %v1081, %v1081
        %v1086 = vpack.c.b16 %v1082, %v1082
        %v1087 = vpack.c.b16 %v1083, %v1083
        %1088 = vxpose.xlu0.c.b16.start [1/8] %v931, 128
        %1089 = vxpose.xlu0.c.b16.cont [2/8] 0, 128
        %1090 = vxpose.xlu0.c.b16.cont [3/8] 0, 128
        %1091 = vxpose.xlu0.c.b16.cont [4/8] 0, 128
        %1092 = vxpose.xlu0.c.b16.cont [5/8] 0, 128
        %1093 = vxpose.xlu0.c.b16.cont [6/8] 0, 128
        %1094 = vxpose.xlu0.c.b16.cont [7/8] 0, 128
        %1095 = vxpose.xlu0.c.b16.end [8/8] 0, 128
        %v1096 = vpop.trf.xlu0
        %v1097 = vpop.trf.xlu0
        %v1098 = vpop.trf.xlu0
        %v1099 = vpop.trf.xlu0
        %v1100 = vpop.trf.xlu0
        %v1101 = vpop.trf.xlu0
        %v1102 = vpop.trf.xlu0
        %v1103 = vpop.trf.xlu0
        %vm1104 = vcmask 64512
        %v1106 = vsel %vm1104, %v1096, 0
        %vm1108 = vcmask 1043456
        %v1110 = vsel %vm1108, %v997, 0
        %1112 = vmatprep.subr.bf16.mxu0 0
        %1113 = vmatpush1.bf16.msra.mxu0 %v1110
        %1114 = vmatprep.subr.bf16.mxu0 0
        %1115 = vmatpush1.bf16.msra.mxu0 0
        %1116 = vmatprep.subr.bf16.mxu0 0
        %1117 = vmatpush1.bf16.msra.mxu0 0
        %1118 = vmatprep.subr.bf16.mxu0 0
        %1119 = vmatpush1.bf16.msra.mxu0 0
        %1120 = vmatprep.subr.bf16.mxu0 0
        %1121 = vmatpush1.bf16.msra.mxu0 0
        %1122 = vmatprep.subr.bf16.mxu0 0
        %1123 = vmatpush1.bf16.msra.mxu0 0
        %1124 = vmatprep.subr.bf16.mxu0 0
        %1125 = vmatpush1.bf16.msra.mxu0 0
        %1126 = vmatprep.subr.bf16.mxu0 0
        %1127 = vmatpush1.bf16.msra.mxu0 0
        %1128 = vmatprep.subr.bf16.mxu0 0
        %1129 = vmatpush1.bf16.msra.mxu0 0
        %1130 = vmatprep.subr.bf16.mxu0 0
        %1131 = vmatpush1.bf16.msra.mxu0 0
        %1132 = vmatprep.subr.bf16.mxu0 0
        %1133 = vmatpush1.bf16.msra.mxu0 0
        %1134 = vmatprep.subr.bf16.mxu0 0
        %1135 = vmatpush1.bf16.msra.mxu0 0
        %1136 = vmatprep.subr.bf16.mxu0 0
        %1137 = vmatpush1.bf16.msra.mxu0 0
        %1138 = vmatprep.subr.bf16.mxu0 0
        %1139 = vmatpush1.bf16.msra.mxu0 0
        %1140 = vmatprep.subr.bf16.mxu0 0
        %1141 = vmatpush1.bf16.msra.mxu0 0
        %1142 = vmatprep.subr.bf16.mxu0 0
        %1143 = vmatpush1.bf16.msra.mxu0 0
        %1144 = vmatprep.mubr.bf16.mxu0 0
        %1145 = vmatmul.mubr.bf16.gmra.mrb[0].mxu0 %v1106
        %v1146 = vpop.f32.mrb[0].mxu0
        %v1147 = vadd.f32 0.0, %v1146
        %v1148 = vpop.f32.mrb[0].mxu0
        %v1149 = vpop.f32.mrb[0].mxu0
        %v1150 = vpop.f32.mrb[0].mxu0
        %1151 = vdwg.mxu0
        %1152 = vxpose.xlu0.c.b16.start [1/8] %v932, 128
        %1153 = vxpose.xlu0.c.b16.cont [2/8] 0, 128
        %1154 = vxpose.xlu0.c.b16.cont [3/8] 0, 128
        %1155 = vxpose.xlu0.c.b16.cont [4/8] 0, 128
        %1156 = vxpose.xlu0.c.b16.cont [5/8] 0, 128
        %1157 = vxpose.xlu0.c.b16.cont [6/8] 0, 128
        %1158 = vxpose.xlu0.c.b16.cont [7/8] 0, 128
        %1159 = vxpose.xlu0.c.b16.end [8/8] 0, 128
        %v1160 = vpop.trf.xlu0
        %v1161 = vpop.trf.xlu0
        %v1162 = vpop.trf.xlu0
        %v1163 = vpop.trf.xlu0
        %v1164 = vpop.trf.xlu0
        %v1165 = vpop.trf.xlu0
        %v1166 = vpop.trf.xlu0
        %v1167 = vpop.trf.xlu0
        %v1169 = vsel %vm1104, %v1160, 0
        %v1172 = vsel %vm1108, %v998, 0
        %1174 = vmatprep.subr.bf16.mxu0 0
        %1175 = vmatpush1.bf16.msra.mxu0 %v1172
        %1176 = vmatprep.subr.bf16.mxu0 0
        %1177 = vmatpush1.bf16.msra.mxu0 0
        %1178 = vmatprep.subr.bf16.mxu0 0
        %1179 = vmatpush1.bf16.msra.mxu0 0
        %1180 = vmatprep.subr.bf16.mxu0 0
        %1181 = vmatpush1.bf16.msra.mxu0 0
        %1182 = vmatprep.subr.bf16.mxu0 0
        %1183 = vmatpush1.bf16.msra.mxu0 0
        %1184 = vmatprep.subr.bf16.mxu0 0
        %1185 = vmatpush1.bf16.msra.mxu0 0
        %1186 = vmatprep.subr.bf16.mxu0 0
        %1187 = vmatpush1.bf16.msra.mxu0 0
        %1188 = vmatprep.subr.bf16.mxu0 0
        %1189 = vmatpush1.bf16.msra.mxu0 0
        %1190 = vmatprep.subr.bf16.mxu0 0
        %1191 = vmatpush1.bf16.msra.mxu0 0
        %1192 = vmatprep.subr.bf16.mxu0 0
        %1193 = vmatpush1.bf16.msra.mxu0 0
        %1194 = vmatprep.subr.bf16.mxu0 0
        %1195 = vmatpush1.bf16.msra.mxu0 0
        %1196 = vmatprep.subr.bf16.mxu0 0
        %1197 = vmatpush1.bf16.msra.mxu0 0
        %1198 = vmatprep.subr.bf16.mxu0 0
        %1199 = vmatpush1.bf16.msra.mxu0 0
        %1200 = vmatprep.subr.bf16.mxu0 0
        %1201 = vmatpush1.bf16.msra.mxu0 0
        %1202 = vmatprep.subr.bf16.mxu0 0
        %1203 = vmatpush1.bf16.msra.mxu0 0
        %1204 = vmatprep.subr.bf16.mxu0 0
        %1205 = vmatpush1.bf16.msra.mxu0 0
        %1206 = vmatprep.mubr.bf16.mxu0 0
        %1207 = vmatmul.mubr.bf16.gmra.mrb[0].mxu0 %v1169
        %v1208 = vpop.f32.mrb[0].mxu0
        %v1209 = vadd.f32 0.0, %v1208
        %v1210 = vpop.f32.mrb[0].mxu0
        %v1211 = vpop.f32.mrb[0].mxu0
        %v1212 = vpop.f32.mrb[0].mxu0
        %1213 = vdwg.mxu0
        %1214 = vxpose.xlu0.c.b16.start [1/8] %v933, 128
        %1215 = vxpose.xlu0.c.b16.cont [2/8] 0, 128
        %1216 = vxpose.xlu0.c.b16.cont [3/8] 0, 128
        %1217 = vxpose.xlu0.c.b16.cont [4/8] 0, 128
        %1218 = vxpose.xlu0.c.b16.cont [5/8] 0, 128
        %1219 = vxpose.xlu0.c.b16.cont [6/8] 0, 128
        %1220 = vxpose.xlu0.c.b16.cont [7/8] 0, 128
        %1221 = vxpose.xlu0.c.b16.end [8/8] 0, 128
        %v1222 = vpop.trf.xlu0
        %v1223 = vpop.trf.xlu0
        %v1224 = vpop.trf.xlu0
        %v1225 = vpop.trf.xlu0
        %v1226 = vpop.trf.xlu0
        %v1227 = vpop.trf.xlu0
        %v1228 = vpop.trf.xlu0
        %v1229 = vpop.trf.xlu0
        %v1231 = vsel %vm1104, %v1222, 0
        %v1234 = vsel %vm1108, %v999, 0
        %1236 = vmatprep.subr.bf16.mxu0 0
        %1237 = vmatpush1.bf16.msra.mxu0 %v1234
        %1238 = vmatprep.subr.bf16.mxu0 0
        %1239 = vmatpush1.bf16.msra.mxu0 0
        %1240 = vmatprep.subr.bf16.mxu0 0
        %1241 = vmatpush1.bf16.msra.mxu0 0
        %1242 = vmatprep.subr.bf16.mxu0 0
        %1243 = vmatpush1.bf16.msra.mxu0 0
        %1244 = vmatprep.subr.bf16.mxu0 0
        %1245 = vmatpush1.bf16.msra.mxu0 0
        %1246 = vmatprep.subr.bf16.mxu0 0
        %1247 = vmatpush1.bf16.msra.mxu0 0
        %1248 = vmatprep.subr.bf16.mxu0 0
        %1249 = vmatpush1.bf16.msra.mxu0 0
        %1250 = vmatprep.subr.bf16.mxu0 0
        %1251 = vmatpush1.bf16.msra.mxu0 0
        %1252 = vmatprep.subr.bf16.mxu0 0
        %1253 = vmatpush1.bf16.msra.mxu0 0
        %1254 = vmatprep.subr.bf16.mxu0 0
        %1255 = vmatpush1.bf16.msra.mxu0 0
        %1256 = vmatprep.subr.bf16.mxu0 0
        %1257 = vmatpush1.bf16.msra.mxu0 0
        %1258 = vmatprep.subr.bf16.mxu0 0
        %1259 = vmatpush1.bf16.msra.mxu0 0
        %1260 = vmatprep.subr.bf16.mxu0 0
        %1261 = vmatpush1.bf16.msra.mxu0 0
        %1262 = vmatprep.subr.bf16.mxu0 0
        %1263 = vmatpush1.bf16.msra.mxu0 0
        %1264 = vmatprep.subr.bf16.mxu0 0
        %1265 = vmatpush1.bf16.msra.mxu0 0
        %1266 = vmatprep.subr.bf16.mxu0 0
        %1267 = vmatpush1.bf16.msra.mxu0 0
        %1268 = vmatprep.mubr.bf16.mxu0 0
        %1269 = vmatmul.mubr.bf16.gmra.mrb[0].mxu0 %v1231
        %v1270 = vpop.f32.mrb[0].mxu0
        %v1271 = vadd.f32 0.0, %v1270
        %v1272 = vpop.f32.mrb[0].mxu0
        %v1273 = vpop.f32.mrb[0].mxu0
        %v1274 = vpop.f32.mrb[0].mxu0
        %1275 = vdwg.mxu0
        %1276 = vxpose.xlu0.c.b16.start [1/8] %v934, 128
        %1277 = vxpose.xlu0.c.b16.cont [2/8] 0, 128
        %1278 = vxpose.xlu0.c.b16.cont [3/8] 0, 128
        %1279 = vxpose.xlu0.c.b16.cont [4/8] 0, 128
        %1280 = vxpose.xlu0.c.b16.cont [5/8] 0, 128
        %1281 = vxpose.xlu0.c.b16.cont [6/8] 0, 128
        %1282 = vxpose.xlu0.c.b16.cont [7/8] 0, 128
        %1283 = vxpose.xlu0.c.b16.end [8/8] 0, 128
        %v1284 = vpop.trf.xlu0
        %v1285 = vpop.trf.xlu0
        %v1286 = vpop.trf.xlu0
        %v1287 = vpop.trf.xlu0
        %v1288 = vpop.trf.xlu0
        %v1289 = vpop.trf.xlu0
        %v1290 = vpop.trf.xlu0
        %v1291 = vpop.trf.xlu0
        %v1293 = vsel %vm1104, %v1284, 0
        %v1296 = vsel %vm1108, %v1000, 0
        %1298 = vmatprep.subr.bf16.mxu0 0
        %1299 = vmatpush1.bf16.msra.mxu0 %v1296
        %1300 = vmatprep.subr.bf16.mxu0 0
        %1301 = vmatpush1.bf16.msra.mxu0 0
        %1302 = vmatprep.subr.bf16.mxu0 0
        %1303 = vmatpush1.bf16.msra.mxu0 0
        %1304 = vmatprep.subr.bf16.mxu0 0
        %1305 = vmatpush1.bf16.msra.mxu0 0
        %1306 = vmatprep.subr.bf16.mxu0 0
        %1307 = vmatpush1.bf16.msra.mxu0 0
        %1308 = vmatprep.subr.bf16.mxu0 0
        %1309 = vmatpush1.bf16.msra.mxu0 0
        %1310 = vmatprep.subr.bf16.mxu0 0
        %1311 = vmatpush1.bf16.msra.mxu0 0
        %1312 = vmatprep.subr.bf16.mxu0 0
        %1313 = vmatpush1.bf16.msra.mxu0 0
        %1314 = vmatprep.subr.bf16.mxu0 0
        %1315 = vmatpush1.bf16.msra.mxu0 0
        %1316 = vmatprep.subr.bf16.mxu0 0
        %1317 = vmatpush1.bf16.msra.mxu0 0
        %1318 = vmatprep.subr.bf16.mxu0 0
        %1319 = vmatpush1.bf16.msra.mxu0 0
        %1320 = vmatprep.subr.bf16.mxu0 0
        %1321 = vmatpush1.bf16.msra.mxu0 0
        %1322 = vmatprep.subr.bf16.mxu0 0
        %1323 = vmatpush1.bf16.msra.mxu0 0
        %1324 = vmatprep.subr.bf16.mxu0 0
        %1325 = vmatpush1.bf16.msra.mxu0 0
        %1326 = vmatprep.subr.bf16.mxu0 0
        %1327 = vmatpush1.bf16.msra.mxu0 0
        %1328 = vmatprep.subr.bf16.mxu0 0
        %1329 = vmatpush1.bf16.msra.mxu0 0
        %1330 = vmatprep.mubr.bf16.mxu0 0
        %1331 = vmatmul.mubr.bf16.gmra.mrb[0].mxu0 %v1293
        %v1332 = vpop.f32.mrb[0].mxu0
        %v1333 = vadd.f32 0.0, %v1332
        %v1334 = vpop.f32.mrb[0].mxu0
        %v1335 = vpop.f32.mrb[0].mxu0
        %v1336 = vpop.f32.mrb[0].mxu0
        %1337 = vdwg.mxu0
        %1338 = vxpose.xlu0.c.b16.start [1/8] %v964, 128
        %1339 = vxpose.xlu0.c.b16.cont [2/8] 0, 128
        %1340 = vxpose.xlu0.c.b16.cont [3/8] 0, 128
        %1341 = vxpose.xlu0.c.b16.cont [4/8] 0, 128
        %1342 = vxpose.xlu0.c.b16.cont [5/8] 0, 128
        %1343 = vxpose.xlu0.c.b16.cont [6/8] 0, 128
        %1344 = vxpose.xlu0.c.b16.cont [7/8] 0, 128
        %1345 = vxpose.xlu0.c.b16.end [8/8] 0, 128
        %v1346 = vpop.trf.xlu0
        %v1347 = vpop.trf.xlu0
        %v1348 = vpop.trf.xlu0
        %v1349 = vpop.trf.xlu0
        %v1350 = vpop.trf.xlu0
        %v1351 = vpop.trf.xlu0
        %v1352 = vpop.trf.xlu0
        %v1353 = vpop.trf.xlu0
        %v1355 = vsel %vm1104, %v1346, 0
        %v1358 = vsel %vm1108, %v1026, 0
        %1360 = vmatprep.subr.bf16.mxu0 0
        %1361 = vmatpush1.bf16.msra.mxu0 %v1358
        %1362 = vmatprep.subr.bf16.mxu0 0
        %1363 = vmatpush1.bf16.msra.mxu0 0
        %1364 = vmatprep.subr.bf16.mxu0 0
        %1365 = vmatpush1.bf16.msra.mxu0 0
        %1366 = vmatprep.subr.bf16.mxu0 0
        %1367 = vmatpush1.bf16.msra.mxu0 0
        %1368 = vmatprep.subr.bf16.mxu0 0
        %1369 = vmatpush1.bf16.msra.mxu0 0
        %1370 = vmatprep.subr.bf16.mxu0 0
        %1371 = vmatpush1.bf16.msra.mxu0 0
        %1372 = vmatprep.subr.bf16.mxu0 0
        %1373 = vmatpush1.bf16.msra.mxu0 0
        %1374 = vmatprep.subr.bf16.mxu0 0
        %1375 = vmatpush1.bf16.msra.mxu0 0
        %1376 = vmatprep.subr.bf16.mxu0 0
        %1377 = vmatpush1.bf16.msra.mxu0 0
        %1378 = vmatprep.subr.bf16.mxu0 0
        %1379 = vmatpush1.bf16.msra.mxu0 0
        %1380 = vmatprep.subr.bf16.mxu0 0
        %1381 = vmatpush1.bf16.msra.mxu0 0
        %1382 = vmatprep.subr.bf16.mxu0 0
        %1383 = vmatpush1.bf16.msra.mxu0 0
        %1384 = vmatprep.subr.bf16.mxu0 0
        %1385 = vmatpush1.bf16.msra.mxu0 0
        %1386 = vmatprep.subr.bf16.mxu0 0
        %1387 = vmatpush1.bf16.msra.mxu0 0
        %1388 = vmatprep.subr.bf16.mxu0 0
        %1389 = vmatpush1.bf16.msra.mxu0 0
        %1390 = vmatprep.subr.bf16.mxu0 0
        %1391 = vmatpush1.bf16.msra.mxu0 0
        %1392 = vmatprep.mubr.bf16.mxu0 0
        %1393 = vmatmul.mubr.bf16.gmra.mrb[0].mxu0 %v1355
        %v1394 = vpop.f32.mrb[0].mxu0
        %v1395 = vadd.f32 0.0, %v1394
        %v1396 = vpop.f32.mrb[0].mxu0
        %v1397 = vpop.f32.mrb[0].mxu0
        %v1398 = vpop.f32.mrb[0].mxu0
        %1399 = vdwg.mxu0
        %1400 = vxpose.xlu0.c.b16.start [1/8] %v965, 128
        %1401 = vxpose.xlu0.c.b16.cont [2/8] 0, 128
        %1402 = vxpose.xlu0.c.b16.cont [3/8] 0, 128
        %1403 = vxpose.xlu0.c.b16.cont [4/8] 0, 128
        %1404 = vxpose.xlu0.c.b16.cont [5/8] 0, 128
        %1405 = vxpose.xlu0.c.b16.cont [6/8] 0, 128
        %1406 = vxpose.xlu0.c.b16.cont [7/8] 0, 128
        %1407 = vxpose.xlu0.c.b16.end [8/8] 0, 128
        %v1408 = vpop.trf.xlu0
        %v1409 = vpop.trf.xlu0
        %v1410 = vpop.trf.xlu0
        %v1411 = vpop.trf.xlu0
        %v1412 = vpop.trf.xlu0
        %v1413 = vpop.trf.xlu0
        %v1414 = vpop.trf.xlu0
        %v1415 = vpop.trf.xlu0
        %v1417 = vsel %vm1104, %v1408, 0
        %v1420 = vsel %vm1108, %v1027, 0
        %1422 = vmatprep.subr.bf16.mxu0 0
        %1423 = vmatpush1.bf16.msra.mxu0 %v1420
        %1424 = vmatprep.subr.bf16.mxu0 0
        %1425 = vmatpush1.bf16.msra.mxu0 0
        %1426 = vmatprep.subr.bf16.mxu0 0
        %1427 = vmatpush1.bf16.msra.mxu0 0
        %1428 = vmatprep.subr.bf16.mxu0 0
        %1429 = vmatpush1.bf16.msra.mxu0 0
        %1430 = vmatprep.subr.bf16.mxu0 0
        %1431 = vmatpush1.bf16.msra.mxu0 0
        %1432 = vmatprep.subr.bf16.mxu0 0
        %1433 = vmatpush1.bf16.msra.mxu0 0
        %1434 = vmatprep.subr.bf16.mxu0 0
        %1435 = vmatpush1.bf16.msra.mxu0 0
        %1436 = vmatprep.subr.bf16.mxu0 0
        %1437 = vmatpush1.bf16.msra.mxu0 0
        %1438 = vmatprep.subr.bf16.mxu0 0
        %1439 = vmatpush1.bf16.msra.mxu0 0
        %1440 = vmatprep.subr.bf16.mxu0 0
        %1441 = vmatpush1.bf16.msra.mxu0 0
        %1442 = vmatprep.subr.bf16.mxu0 0
        %1443 = vmatpush1.bf16.msra.mxu0 0
        %1444 = vmatprep.subr.bf16.mxu0 0
        %1445 = vmatpush1.bf16.msra.mxu0 0
        %1446 = vmatprep.subr.bf16.mxu0 0
        %1447 = vmatpush1.bf16.msra.mxu0 0
        %1448 = vmatprep.subr.bf16.mxu0 0
        %1449 = vmatpush1.bf16.msra.mxu0 0
        %1450 = vmatprep.subr.bf16.mxu0 0
        %1451 = vmatpush1.bf16.msra.mxu0 0
        %1452 = vmatprep.subr.bf16.mxu0 0
        %1453 = vmatpush1.bf16.msra.mxu0 0
        %1454 = vmatprep.mubr.bf16.mxu0 0
        %1455 = vmatmul.mubr.bf16.gmra.mrb[0].mxu0 %v1417
        %v1456 = vpop.f32.mrb[0].mxu0
        %v1457 = vadd.f32 0.0, %v1456
        %v1458 = vpop.f32.mrb[0].mxu0
        %v1459 = vpop.f32.mrb[0].mxu0
        %v1460 = vpop.f32.mrb[0].mxu0
        %1461 = vdwg.mxu0
        %1462 = vxpose.xlu0.c.b16.start [1/8] %v966, 128
        %1463 = vxpose.xlu0.c.b16.cont [2/8] 0, 128
        %1464 = vxpose.xlu0.c.b16.cont [3/8] 0, 128
        %1465 = vxpose.xlu0.c.b16.cont [4/8] 0, 128
        %1466 = vxpose.xlu0.c.b16.cont [5/8] 0, 128
        %1467 = vxpose.xlu0.c.b16.cont [6/8] 0, 128
        %1468 = vxpose.xlu0.c.b16.cont [7/8] 0, 128
        %1469 = vxpose.xlu0.c.b16.end [8/8] 0, 128
        %v1470 = vpop.trf.xlu0
        %v1471 = vpop.trf.xlu0
        %v1472 = vpop.trf.xlu0
        %v1473 = vpop.trf.xlu0
        %v1474 = vpop.trf.xlu0
        %v1475 = vpop.trf.xlu0
        %v1476 = vpop.trf.xlu0
        %v1477 = vpop.trf.xlu0
        %v1479 = vsel %vm1104, %v1470, 0
        %v1482 = vsel %vm1108, %v1028, 0
        %1484 = vmatprep.subr.bf16.mxu0 0
        %1485 = vmatpush1.bf16.msra.mxu0 %v1482
        %1486 = vmatprep.subr.bf16.mxu0 0
        %1487 = vmatpush1.bf16.msra.mxu0 0
        %1488 = vmatprep.subr.bf16.mxu0 0
        %1489 = vmatpush1.bf16.msra.mxu0 0
        %1490 = vmatprep.subr.bf16.mxu0 0
        %1491 = vmatpush1.bf16.msra.mxu0 0
        %1492 = vmatprep.subr.bf16.mxu0 0
        %1493 = vmatpush1.bf16.msra.mxu0 0
        %1494 = vmatprep.subr.bf16.mxu0 0
        %1495 = vmatpush1.bf16.msra.mxu0 0
        %1496 = vmatprep.subr.bf16.mxu0 0
        %1497 = vmatpush1.bf16.msra.mxu0 0
        %1498 = vmatprep.subr.bf16.mxu0 0
        %1499 = vmatpush1.bf16.msra.mxu0 0
        %1500 = vmatprep.subr.bf16.mxu0 0
        %1501 = vmatpush1.bf16.msra.mxu0 0
        %1502 = vmatprep.subr.bf16.mxu0 0
        %1503 = vmatpush1.bf16.msra.mxu0 0
        %1504 = vmatprep.subr.bf16.mxu0 0
        %1505 = vmatpush1.bf16.msra.mxu0 0
        %1506 = vmatprep.subr.bf16.mxu0 0
        %1507 = vmatpush1.bf16.msra.mxu0 0
        %1508 = vmatprep.subr.bf16.mxu0 0
        %1509 = vmatpush1.bf16.msra.mxu0 0
        %1510 = vmatprep.subr.bf16.mxu0 0
        %1511 = vmatpush1.bf16.msra.mxu0 0
        %1512 = vmatprep.subr.bf16.mxu0 0
        %1513 = vmatpush1.bf16.msra.mxu0 0
        %1514 = vmatprep.subr.bf16.mxu0 0
        %1515 = vmatpush1.bf16.msra.mxu0 0
        %1516 = vmatprep.mubr.bf16.mxu0 0
        %1517 = vmatmul.mubr.bf16.gmra.mrb[0].mxu0 %v1479
        %v1518 = vpop.f32.mrb[0].mxu0
        %v1519 = vadd.f32 0.0, %v1518
        %v1520 = vpop.f32.mrb[0].mxu0
        %v1521 = vpop.f32.mrb[0].mxu0
        %v1522 = vpop.f32.mrb[0].mxu0
        %1523 = vdwg.mxu0
        %1524 = vxpose.xlu0.c.b16.start [1/8] %v967, 128
        %1525 = vxpose.xlu0.c.b16.cont [2/8] 0, 128
        %1526 = vxpose.xlu0.c.b16.cont [3/8] 0, 128
        %1527 = vxpose.xlu0.c.b16.cont [4/8] 0, 128
        %1528 = vxpose.xlu0.c.b16.cont [5/8] 0, 128
        %1529 = vxpose.xlu0.c.b16.cont [6/8] 0, 128
        %1530 = vxpose.xlu0.c.b16.cont [7/8] 0, 128
        %1531 = vxpose.xlu0.c.b16.end [8/8] 0, 128
        %v1532 = vpop.trf.xlu0
        %v1533 = vpop.trf.xlu0
        %v1534 = vpop.trf.xlu0
        %v1535 = vpop.trf.xlu0
        %v1536 = vpop.trf.xlu0
        %v1537 = vpop.trf.xlu0
        %v1538 = vpop.trf.xlu0
        %v1539 = vpop.trf.xlu0
        %v1541 = vsel %vm1104, %v1532, 0
        %v1544 = vsel %vm1108, %v1029, 0
        %1546 = vmatprep.subr.bf16.mxu0 0
        %1547 = vmatpush1.bf16.msra.mxu0 %v1544
        %1548 = vmatprep.subr.bf16.mxu0 0
        %1549 = vmatpush1.bf16.msra.mxu0 0
        %1550 = vmatprep.subr.bf16.mxu0 0
        %1551 = vmatpush1.bf16.msra.mxu0 0
        %1552 = vmatprep.subr.bf16.mxu0 0
        %1553 = vmatpush1.bf16.msra.mxu0 0
        %1554 = vmatprep.subr.bf16.mxu0 0
        %1555 = vmatpush1.bf16.msra.mxu0 0
        %1556 = vmatprep.subr.bf16.mxu0 0
        %1557 = vmatpush1.bf16.msra.mxu0 0
        %1558 = vmatprep.subr.bf16.mxu0 0
        %1559 = vmatpush1.bf16.msra.mxu0 0
        %1560 = vmatprep.subr.bf16.mxu0 0
        %1561 = vmatpush1.bf16.msra.mxu0 0
        %1562 = vmatprep.subr.bf16.mxu0 0
        %1563 = vmatpush1.bf16.msra.mxu0 0
        %1564 = vmatprep.subr.bf16.mxu0 0
        %1565 = vmatpush1.bf16.msra.mxu0 0
        %1566 = vmatprep.subr.bf16.mxu0 0
        %1567 = vmatpush1.bf16.msra.mxu0 0
        %1568 = vmatprep.subr.bf16.mxu0 0
        %1569 = vmatpush1.bf16.msra.mxu0 0
        %1570 = vmatprep.subr.bf16.mxu0 0
        %1571 = vmatpush1.bf16.msra.mxu0 0
        %1572 = vmatprep.subr.bf16.mxu0 0
        %1573 = vmatpush1.bf16.msra.mxu0 0
        %1574 = vmatprep.subr.bf16.mxu0 0
        %1575 = vmatpush1.bf16.msra.mxu0 0
        %1576 = vmatprep.subr.bf16.mxu0 0
        %1577 = vmatpush1.bf16.msra.mxu0 0
        %1578 = vmatprep.mubr.bf16.mxu0 0
        %1579 = vmatmul.mubr.bf16.gmra.mrb[0].mxu0 %v1541
        %v1580 = vpop.f32.mrb[0].mxu0
        %v1581 = vadd.f32 0.0, %v1580
        %v1582 = vpop.f32.mrb[0].mxu0
        %v1583 = vpop.f32.mrb[0].mxu0
        %v1584 = vpop.f32.mrb[0].mxu0
        %1585 = vdwg.mxu0
        %v1586 = vsel %vm1104, %v1147, -inf
        %1587 = vmax.xlane.f32.xlu0 %v1586
        %v1588 = vpop.xlane.xlu0 %1587
        %v1589 = vsel %vm1104, %v1209, -inf
        %1590 = vmax.xlane.f32.xlu0 %v1589
        %v1591 = vpop.xlane.xlu0 %1590
        %v1592 = vsel %vm1104, %v1271, -inf
        %1593 = vmax.xlane.f32.xlu0 %v1592
        %v1594 = vpop.xlane.xlu0 %1593
        %v1595 = vsel %vm1104, %v1333, -inf
        %1596 = vmax.xlane.f32.xlu0 %v1595
        %v1597 = vpop.xlane.xlu0 %1596
        %v1598 = vsel %vm1104, %v1395, -inf
        %1599 = vmax.xlane.f32.xlu0 %v1598
        %v1600 = vpop.xlane.xlu0 %1599
        %v1601 = vsel %vm1104, %v1457, -inf
        %1602 = vmax.xlane.f32.xlu0 %v1601
        %v1603 = vpop.xlane.xlu0 %1602
        %v1604 = vsel %vm1104, %v1519, -inf
        %1605 = vmax.xlane.f32.xlu0 %v1604
        %v1606 = vpop.xlane.xlu0 %1605
        %v1607 = vsel %vm1104, %v1581, -inf
        %1608 = vmax.xlane.f32.xlu0 %v1607
        %v1609 = vpop.xlane.xlu0 %1608
        %v1610 = vsub.f32 %v1147, %v1588
        %v1611 = vsub.f32 %v1209, %v1591
        %v1612 = vsub.f32 %v1271, %v1594
        %v1613 = vsub.f32 %v1333, %v1597
        %v1614 = vsub.f32 %v1395, %v1600
        %v1615 = vsub.f32 %v1457, %v1603
        %v1616 = vsub.f32 %v1519, %v1606
        %v1617 = vsub.f32 %v1581, %v1609
        %v1618 = vmul.f32 %v1610, 1.442695
        %v1619 = vpow.pop %v1618
        %v1620 = vmul.f32 %v1611, 1.442695
        %v1621 = vpow.pop %v1620
        %v1622 = vmul.f32 %v1612, 1.442695
        %v1623 = vpow.pop %v1622
        %v1624 = vmul.f32 %v1613, 1.442695
        %v1625 = vpow.pop %v1624
        %v1626 = vmul.f32 %v1614, 1.442695
        %v1627 = vpow.pop %v1626
        %v1628 = vmul.f32 %v1615, 1.442695
        %v1629 = vpow.pop %v1628
        %v1630 = vmul.f32 %v1616, 1.442695
        %v1631 = vpow.pop %v1630
        %v1632 = vmul.f32 %v1617, 1.442695
        %v1633 = vpow.pop %v1632
        %v1634 = vsel %vm1104, %v1619, 0.0
        %1635 = vadd.xlane.f32.xlu0 %v1634
        %v1636 = vpop.xlane.xlu0 %1635
        %v1637 = vsel %vm1104, %v1621, 0.0
        %1638 = vadd.xlane.f32.xlu0 %v1637
        %v1639 = vpop.xlane.xlu0 %1638
        %v1640 = vsel %vm1104, %v1623, 0.0
        %1641 = vadd.xlane.f32.xlu0 %v1640
        %v1642 = vpop.xlane.xlu0 %1641
        %v1643 = vsel %vm1104, %v1625, 0.0
        %1644 = vadd.xlane.f32.xlu0 %v1643
        %v1645 = vpop.xlane.xlu0 %1644
        %v1646 = vsel %vm1104, %v1627, 0.0
        %1647 = vadd.xlane.f32.xlu0 %v1646
        %v1648 = vpop.xlane.xlu0 %1647
        %v1649 = vsel %vm1104, %v1629, 0.0
        %1650 = vadd.xlane.f32.xlu0 %v1649
        %v1651 = vpop.xlane.xlu0 %1650
        %v1652 = vsel %vm1104, %v1631, 0.0
        %1653 = vadd.xlane.f32.xlu0 %v1652
        %v1654 = vpop.xlane.xlu0 %1653
        %v1655 = vsel %vm1104, %v1633, 0.0
        %1656 = vadd.xlane.f32.xlu0 %v1655
        %v1657 = vpop.xlane.xlu0 %1656
        %v1658 = vrcp.pop %v1636
        %v1659 = vrcp.pop %v1639
        %v1660 = vrcp.pop %v1642
        %v1661 = vrcp.pop %v1645
        %v1662 = vrcp.pop %v1648
        %v1663 = vrcp.pop %v1651
        %v1664 = vrcp.pop %v1654
        %v1665 = vrcp.pop %v1657
        %v1666 = vmul.f32 %v1619, %v1658
        %v1667 = vmul.f32 %v1621, %v1659
        %v1668 = vmul.f32 %v1623, %v1660
        %v1669 = vmul.f32 %v1625, %v1661
        %v1670 = vmul.f32 %v1627, %v1662
        %v1671 = vmul.f32 %v1629, %v1663
        %v1672 = vmul.f32 %v1631, %v1664
        %v1673 = vmul.f32 %v1633, %v1665
        %v1674 = vpack.c.bf16 %v1666, %v1666
        %v1675 = vpack.c.bf16 %v1667, %v1667
        %v1676 = vpack.c.bf16 %v1668, %v1668
        %v1677 = vpack.c.bf16 %v1669, %v1669
        %v1678 = vpack.c.bf16 %v1670, %v1670
        %v1679 = vpack.c.bf16 %v1671, %v1671
        %v1680 = vpack.c.bf16 %v1672, %v1672
        %v1681 = vpack.c.bf16 %v1673, %v1673
        %v1683 = vsel %vm1104, %v1055, 0
        %v1686 = vsel %vm1104, %v1674, 0
        %1688 = vmatprep.subr.bf16.mxu0 0
        %1689 = vmatpush1.bf16.xpose.msra.mxu0 %v1686
        %1690 = vmatprep.subr.bf16.mxu0 0
        %1691 = vmatpush1.bf16.xpose.msra.mxu0 0
        %1692 = vmatprep.subr.bf16.mxu0 0
        %1693 = vmatpush1.bf16.xpose.msra.mxu0 0
        %1694 = vmatprep.subr.bf16.mxu0 0
        %1695 = vmatpush1.bf16.xpose.msra.mxu0 0
        %1696 = vmatprep.subr.bf16.mxu0 0
        %1697 = vmatpush1.bf16.xpose.msra.mxu0 0
        %1698 = vmatprep.subr.bf16.mxu0 0
        %1699 = vmatpush1.bf16.xpose.msra.mxu0 0
        %1700 = vmatprep.subr.bf16.mxu0 0
        %1701 = vmatpush1.bf16.xpose.msra.mxu0 0
        %1702 = vmatprep.subr.bf16.mxu0 0
        %1703 = vmatpush1.bf16.xpose.msra.mxu0 0
        %1704 = vmatprep.subr.bf16.mxu0 0
        %1705 = vmatpush1.bf16.xpose.msra.mxu0 0
        %1706 = vmatprep.subr.bf16.mxu0 0
        %1707 = vmatpush1.bf16.xpose.msra.mxu0 0
        %1708 = vmatprep.subr.bf16.mxu0 0
        %1709 = vmatpush1.bf16.xpose.msra.mxu0 0
        %1710 = vmatprep.subr.bf16.mxu0 0
        %1711 = vmatpush1.bf16.xpose.msra.mxu0 0
        %1712 = vmatprep.subr.bf16.mxu0 0
        %1713 = vmatpush1.bf16.xpose.msra.mxu0 0
        %1714 = vmatprep.subr.bf16.mxu0 0
        %1715 = vmatpush1.bf16.xpose.msra.mxu0 0
        %1716 = vmatprep.subr.bf16.mxu0 0
        %1717 = vmatpush1.bf16.xpose.msra.mxu0 0
        %1718 = vmatprep.subr.bf16.mxu0 0
        %1719 = vmatpush1.bf16.xpose.msra.mxu0 0
        %1720 = vmatprep.mubr.bf16.mxu0 0
        %1721 = vmatmul.mubr.bf16.gmra.mrb[0].mxu0 %v1683
        %v1722 = vpop.f32.mrb[0].mxu0
        %v1723 = vadd.f32 0.0, %v1722
        %v1724 = vpop.f32.mrb[0].mxu0
        %v1725 = vpop.f32.mrb[0].mxu0
        %v1726 = vpop.f32.mrb[0].mxu0
        %1727 = vdwg.mxu0
        %v1729 = vsel %vm1104, %v1056, 0
        %v1732 = vsel %vm1104, %v1675, 0
        %1734 = vmatprep.subr.bf16.mxu0 0
        %1735 = vmatpush1.bf16.xpose.msra.mxu0 %v1732
        %1736 = vmatprep.subr.bf16.mxu0 0
        %1737 = vmatpush1.bf16.xpose.msra.mxu0 0
        %1738 = vmatprep.subr.bf16.mxu0 0
        %1739 = vmatpush1.bf16.xpose.msra.mxu0 0
        %1740 = vmatprep.subr.bf16.mxu0 0
        %1741 = vmatpush1.bf16.xpose.msra.mxu0 0
        %1742 = vmatprep.subr.bf16.mxu0 0
        %1743 = vmatpush1.bf16.xpose.msra.mxu0 0
        %1744 = vmatprep.subr.bf16.mxu0 0
        %1745 = vmatpush1.bf16.xpose.msra.mxu0 0
        %1746 = vmatprep.subr.bf16.mxu0 0
        %1747 = vmatpush1.bf16.xpose.msra.mxu0 0
        %1748 = vmatprep.subr.bf16.mxu0 0
        %1749 = vmatpush1.bf16.xpose.msra.mxu0 0
        %1750 = vmatprep.subr.bf16.mxu0 0
        %1751 = vmatpush1.bf16.xpose.msra.mxu0 0
        %1752 = vmatprep.subr.bf16.mxu0 0
        %1753 = vmatpush1.bf16.xpose.msra.mxu0 0
        %1754 = vmatprep.subr.bf16.mxu0 0
        %1755 = vmatpush1.bf16.xpose.msra.mxu0 0
        %1756 = vmatprep.subr.bf16.mxu0 0
        %1757 = vmatpush1.bf16.xpose.msra.mxu0 0
        %1758 = vmatprep.subr.bf16.mxu0 0
        %1759 = vmatpush1.bf16.xpose.msra.mxu0 0
        %1760 = vmatprep.subr.bf16.mxu0 0
        %1761 = vmatpush1.bf16.xpose.msra.mxu0 0
        %1762 = vmatprep.subr.bf16.mxu0 0
        %1763 = vmatpush1.bf16.xpose.msra.mxu0 0
        %1764 = vmatprep.subr.bf16.mxu0 0
        %1765 = vmatpush1.bf16.xpose.msra.mxu0 0
        %1766 = vmatprep.mubr.bf16.mxu0 0
        %1767 = vmatmul.mubr.bf16.gmra.mrb[0].mxu0 %v1729
        %v1768 = vpop.f32.mrb[0].mxu0
        %v1769 = vadd.f32 0.0, %v1768
        %v1770 = vpop.f32.mrb[0].mxu0
        %v1771 = vpop.f32.mrb[0].mxu0
        %v1772 = vpop.f32.mrb[0].mxu0
        %1773 = vdwg.mxu0
        %v1775 = vsel %vm1104, %v1057, 0
        %v1778 = vsel %vm1104, %v1676, 0
        %1780 = vmatprep.subr.bf16.mxu0 0
        %1781 = vmatpush1.bf16.xpose.msra.mxu0 %v1778
        %1782 = vmatprep.subr.bf16.mxu0 0
        %1783 = vmatpush1.bf16.xpose.msra.mxu0 0
        %1784 = vmatprep.subr.bf16.mxu0 0
        %1785 = vmatpush1.bf16.xpose.msra.mxu0 0
        %1786 = vmatprep.subr.bf16.mxu0 0
        %1787 = vmatpush1.bf16.xpose.msra.mxu0 0
        %1788 = vmatprep.subr.bf16.mxu0 0
        %1789 = vmatpush1.bf16.xpose.msra.mxu0 0
        %1790 = vmatprep.subr.bf16.mxu0 0
        %1791 = vmatpush1.bf16.xpose.msra.mxu0 0
        %1792 = vmatprep.subr.bf16.mxu0 0
        %1793 = vmatpush1.bf16.xpose.msra.mxu0 0
        %1794 = vmatprep.subr.bf16.mxu0 0
        %1795 = vmatpush1.bf16.xpose.msra.mxu0 0
        %1796 = vmatprep.subr.bf16.mxu0 0
        %1797 = vmatpush1.bf16.xpose.msra.mxu0 0
        %1798 = vmatprep.subr.bf16.mxu0 0
        %1799 = vmatpush1.bf16.xpose.msra.mxu0 0
        %1800 = vmatprep.subr.bf16.mxu0 0
        %1801 = vmatpush1.bf16.xpose.msra.mxu0 0
        %1802 = vmatprep.subr.bf16.mxu0 0
        %1803 = vmatpush1.bf16.xpose.msra.mxu0 0
        %1804 = vmatprep.subr.bf16.mxu0 0
        %1805 = vmatpush1.bf16.xpose.msra.mxu0 0
        %1806 = vmatprep.subr.bf16.mxu0 0
        %1807 = vmatpush1.bf16.xpose.msra.mxu0 0
        %1808 = vmatprep.subr.bf16.mxu0 0
        %1809 = vmatpush1.bf16.xpose.msra.mxu0 0
        %1810 = vmatprep.subr.bf16.mxu0 0
        %1811 = vmatpush1.bf16.xpose.msra.mxu0 0
        %1812 = vmatprep.mubr.bf16.mxu0 0
        %1813 = vmatmul.mubr.bf16.gmra.mrb[0].mxu0 %v1775
        %v1814 = vpop.f32.mrb[0].mxu0
        %v1815 = vadd.f32 0.0, %v1814
        %v1816 = vpop.f32.mrb[0].mxu0
        %v1817 = vpop.f32.mrb[0].mxu0
        %v1818 = vpop.f32.mrb[0].mxu0
        %1819 = vdwg.mxu0
        %v1821 = vsel %vm1104, %v1058, 0
        %v1824 = vsel %vm1104, %v1677, 0
        %1826 = vmatprep.subr.bf16.mxu0 0
        %1827 = vmatpush1.bf16.xpose.msra.mxu0 %v1824
        %1828 = vmatprep.subr.bf16.mxu0 0
        %1829 = vmatpush1.bf16.xpose.msra.mxu0 0
        %1830 = vmatprep.subr.bf16.mxu0 0
        %1831 = vmatpush1.bf16.xpose.msra.mxu0 0
        %1832 = vmatprep.subr.bf16.mxu0 0
        %1833 = vmatpush1.bf16.xpose.msra.mxu0 0
        %1834 = vmatprep.subr.bf16.mxu0 0
        %1835 = vmatpush1.bf16.xpose.msra.mxu0 0
        %1836 = vmatprep.subr.bf16.mxu0 0
        %1837 = vmatpush1.bf16.xpose.msra.mxu0 0
        %1838 = vmatprep.subr.bf16.mxu0 0
        %1839 = vmatpush1.bf16.xpose.msra.mxu0 0
        %1840 = vmatprep.subr.bf16.mxu0 0
        %1841 = vmatpush1.bf16.xpose.msra.mxu0 0
        %1842 = vmatprep.subr.bf16.mxu0 0
        %1843 = vmatpush1.bf16.xpose.msra.mxu0 0
        %1844 = vmatprep.subr.bf16.mxu0 0
        %1845 = vmatpush1.bf16.xpose.msra.mxu0 0
        %1846 = vmatprep.subr.bf16.mxu0 0
        %1847 = vmatpush1.bf16.xpose.msra.mxu0 0
        %1848 = vmatprep.subr.bf16.mxu0 0
        %1849 = vmatpush1.bf16.xpose.msra.mxu0 0
        %1850 = vmatprep.subr.bf16.mxu0 0
        %1851 = vmatpush1.bf16.xpose.msra.mxu0 0
        %1852 = vmatprep.subr.bf16.mxu0 0
        %1853 = vmatpush1.bf16.xpose.msra.mxu0 0
        %1854 = vmatprep.subr.bf16.mxu0 0
        %1855 = vmatpush1.bf16.xpose.msra.mxu0 0
        %1856 = vmatprep.subr.bf16.mxu0 0
        %1857 = vmatpush1.bf16.xpose.msra.mxu0 0
        %1858 = vmatprep.mubr.bf16.mxu0 0
        %1859 = vmatmul.mubr.bf16.gmra.mrb[0].mxu0 %v1821
        %v1860 = vpop.f32.mrb[0].mxu0
        %v1861 = vadd.f32 0.0, %v1860
        %v1862 = vpop.f32.mrb[0].mxu0
        %v1863 = vpop.f32.mrb[0].mxu0
        %v1864 = vpop.f32.mrb[0].mxu0
        %1865 = vdwg.mxu0
        %v1867 = vsel %vm1104, %v1084, 0
        %v1870 = vsel %vm1104, %v1678, 0
        %1872 = vmatprep.subr.bf16.mxu0 0
        %1873 = vmatpush1.bf16.xpose.msra.mxu0 %v1870
        %1874 = vmatprep.subr.bf16.mxu0 0
        %1875 = vmatpush1.bf16.xpose.msra.mxu0 0
        %1876 = vmatprep.subr.bf16.mxu0 0
        %1877 = vmatpush1.bf16.xpose.msra.mxu0 0
        %1878 = vmatprep.subr.bf16.mxu0 0
        %1879 = vmatpush1.bf16.xpose.msra.mxu0 0
        %1880 = vmatprep.subr.bf16.mxu0 0
        %1881 = vmatpush1.bf16.xpose.msra.mxu0 0
        %1882 = vmatprep.subr.bf16.mxu0 0
        %1883 = vmatpush1.bf16.xpose.msra.mxu0 0
        %1884 = vmatprep.subr.bf16.mxu0 0
        %1885 = vmatpush1.bf16.xpose.msra.mxu0 0
        %1886 = vmatprep.subr.bf16.mxu0 0
        %1887 = vmatpush1.bf16.xpose.msra.mxu0 0
        %1888 = vmatprep.subr.bf16.mxu0 0
        %1889 = vmatpush1.bf16.xpose.msra.mxu0 0
        %1890 = vmatprep.subr.bf16.mxu0 0
        %1891 = vmatpush1.bf16.xpose.msra.mxu0 0
        %1892 = vmatprep.subr.bf16.mxu0 0
        %1893 = vmatpush1.bf16.xpose.msra.mxu0 0
        %1894 = vmatprep.subr.bf16.mxu0 0
        %1895 = vmatpush1.bf16.xpose.msra.mxu0 0
        %1896 = vmatprep.subr.bf16.mxu0 0
        %1897 = vmatpush1.bf16.xpose.msra.mxu0 0
        %1898 = vmatprep.subr.bf16.mxu0 0
        %1899 = vmatpush1.bf16.xpose.msra.mxu0 0
        %1900 = vmatprep.subr.bf16.mxu0 0
        %1901 = vmatpush1.bf16.xpose.msra.mxu0 0
        %1902 = vmatprep.subr.bf16.mxu0 0
        %1903 = vmatpush1.bf16.xpose.msra.mxu0 0
        %1904 = vmatprep.mubr.bf16.mxu0 0
        %1905 = vmatmul.mubr.bf16.gmra.mrb[0].mxu0 %v1867
        %v1906 = vpop.f32.mrb[0].mxu0
        %v1907 = vadd.f32 0.0, %v1906
        %v1908 = vpop.f32.mrb[0].mxu0
        %v1909 = vpop.f32.mrb[0].mxu0
        %v1910 = vpop.f32.mrb[0].mxu0
        %1911 = vdwg.mxu0
        %v1913 = vsel %vm1104, %v1085, 0
        %v1916 = vsel %vm1104, %v1679, 0
        %1918 = vmatprep.subr.bf16.mxu0 0
        %1919 = vmatpush1.bf16.xpose.msra.mxu0 %v1916
        %1920 = vmatprep.subr.bf16.mxu0 0
        %1921 = vmatpush1.bf16.xpose.msra.mxu0 0
        %1922 = vmatprep.subr.bf16.mxu0 0
        %1923 = vmatpush1.bf16.xpose.msra.mxu0 0
        %1924 = vmatprep.subr.bf16.mxu0 0
        %1925 = vmatpush1.bf16.xpose.msra.mxu0 0
        %1926 = vmatprep.subr.bf16.mxu0 0
        %1927 = vmatpush1.bf16.xpose.msra.mxu0 0
        %1928 = vmatprep.subr.bf16.mxu0 0
        %1929 = vmatpush1.bf16.xpose.msra.mxu0 0
        %1930 = vmatprep.subr.bf16.mxu0 0
        %1931 = vmatpush1.bf16.xpose.msra.mxu0 0
        %1932 = vmatprep.subr.bf16.mxu0 0
        %1933 = vmatpush1.bf16.xpose.msra.mxu0 0
        %1934 = vmatprep.subr.bf16.mxu0 0
        %1935 = vmatpush1.bf16.xpose.msra.mxu0 0
        %1936 = vmatprep.subr.bf16.mxu0 0
        %1937 = vmatpush1.bf16.xpose.msra.mxu0 0
        %1938 = vmatprep.subr.bf16.mxu0 0
        %1939 = vmatpush1.bf16.xpose.msra.mxu0 0
        %1940 = vmatprep.subr.bf16.mxu0 0
        %1941 = vmatpush1.bf16.xpose.msra.mxu0 0
        %1942 = vmatprep.subr.bf16.mxu0 0
        %1943 = vmatpush1.bf16.xpose.msra.mxu0 0
        %1944 = vmatprep.subr.bf16.mxu0 0
        %1945 = vmatpush1.bf16.xpose.msra.mxu0 0
        %1946 = vmatprep.subr.bf16.mxu0 0
        %1947 = vmatpush1.bf16.xpose.msra.mxu0 0
        %1948 = vmatprep.subr.bf16.mxu0 0
        %1949 = vmatpush1.bf16.xpose.msra.mxu0 0
        %1950 = vmatprep.mubr.bf16.mxu0 0
        %1951 = vmatmul.mubr.bf16.gmra.mrb[0].mxu0 %v1913
        %v1952 = vpop.f32.mrb[0].mxu0
        %v1953 = vadd.f32 0.0, %v1952
        %v1954 = vpop.f32.mrb[0].mxu0
        %v1955 = vpop.f32.mrb[0].mxu0
        %v1956 = vpop.f32.mrb[0].mxu0
        %1957 = vdwg.mxu0
        %v1959 = vsel %vm1104, %v1086, 0
        %v1962 = vsel %vm1104, %v1680, 0
        %1964 = vmatprep.subr.bf16.mxu0 0
        %1965 = vmatpush1.bf16.xpose.msra.mxu0 %v1962
        %1966 = vmatprep.subr.bf16.mxu0 0
        %1967 = vmatpush1.bf16.xpose.msra.mxu0 0
        %1968 = vmatprep.subr.bf16.mxu0 0
        %1969 = vmatpush1.bf16.xpose.msra.mxu0 0
        %1970 = vmatprep.subr.bf16.mxu0 0
        %1971 = vmatpush1.bf16.xpose.msra.mxu0 0
        %1972 = vmatprep.subr.bf16.mxu0 0
        %1973 = vmatpush1.bf16.xpose.msra.mxu0 0
        %1974 = vmatprep.subr.bf16.mxu0 0
        %1975 = vmatpush1.bf16.xpose.msra.mxu0 0
        %1976 = vmatprep.subr.bf16.mxu0 0
        %1977 = vmatpush1.bf16.xpose.msra.mxu0 0
        %1978 = vmatprep.subr.bf16.mxu0 0
        %1979 = vmatpush1.bf16.xpose.msra.mxu0 0
        %1980 = vmatprep.subr.bf16.mxu0 0
        %1981 = vmatpush1.bf16.xpose.msra.mxu0 0
        %1982 = vmatprep.subr.bf16.mxu0 0
        %1983 = vmatpush1.bf16.xpose.msra.mxu0 0
        %1984 = vmatprep.subr.bf16.mxu0 0
        %1985 = vmatpush1.bf16.xpose.msra.mxu0 0
        %1986 = vmatprep.subr.bf16.mxu0 0
        %1987 = vmatpush1.bf16.xpose.msra.mxu0 0
        %1988 = vmatprep.subr.bf16.mxu0 0
        %1989 = vmatpush1.bf16.xpose.msra.mxu0 0
        %1990 = vmatprep.subr.bf16.mxu0 0
        %1991 = vmatpush1.bf16.xpose.msra.mxu0 0
        %1992 = vmatprep.subr.bf16.mxu0 0
        %1993 = vmatpush1.bf16.xpose.msra.mxu0 0
        %1994 = vmatprep.subr.bf16.mxu0 0
        %1995 = vmatpush1.bf16.xpose.msra.mxu0 0
        %1996 = vmatprep.mubr.bf16.mxu0 0
        %1997 = vmatmul.mubr.bf16.gmra.mrb[0].mxu0 %v1959
        %v1998 = vpop.f32.mrb[0].mxu0
        %v1999 = vadd.f32 0.0, %v1998
        %v2000 = vpop.f32.mrb[0].mxu0
        %v2001 = vpop.f32.mrb[0].mxu0
        %v2002 = vpop.f32.mrb[0].mxu0
        %2003 = vdwg.mxu0
        %v2005 = vsel %vm1104, %v1087, 0
        %v2008 = vsel %vm1104, %v1681, 0
        %2010 = vmatprep.subr.bf16.mxu0 0
        %2011 = vmatpush1.bf16.xpose.msra.mxu0 %v2008
        %2012 = vmatprep.subr.bf16.mxu0 0
        %2013 = vmatpush1.bf16.xpose.msra.mxu0 0
        %2014 = vmatprep.subr.bf16.mxu0 0
        %2015 = vmatpush1.bf16.xpose.msra.mxu0 0
        %2016 = vmatprep.subr.bf16.mxu0 0
        %2017 = vmatpush1.bf16.xpose.msra.mxu0 0
        %2018 = vmatprep.subr.bf16.mxu0 0
        %2019 = vmatpush1.bf16.xpose.msra.mxu0 0
        %2020 = vmatprep.subr.bf16.mxu0 0
        %2021 = vmatpush1.bf16.xpose.msra.mxu0 0
        %2022 = vmatprep.subr.bf16.mxu0 0
        %2023 = vmatpush1.bf16.xpose.msra.mxu0 0
        %2024 = vmatprep.subr.bf16.mxu0 0
        %2025 = vmatpush1.bf16.xpose.msra.mxu0 0
        %2026 = vmatprep.subr.bf16.mxu0 0
        %2027 = vmatpush1.bf16.xpose.msra.mxu0 0
        %2028 = vmatprep.subr.bf16.mxu0 0
        %2029 = vmatpush1.bf16.xpose.msra.mxu0 0
        %2030 = vmatprep.subr.bf16.mxu0 0
        %2031 = vmatpush1.bf16.xpose.msra.mxu0 0
        %2032 = vmatprep.subr.bf16.mxu0 0
        %2033 = vmatpush1.bf16.xpose.msra.mxu0 0
        %2034 = vmatprep.subr.bf16.mxu0 0
        %2035 = vmatpush1.bf16.xpose.msra.mxu0 0
        %2036 = vmatprep.subr.bf16.mxu0 0
        %2037 = vmatpush1.bf16.xpose.msra.mxu0 0
        %2038 = vmatprep.subr.bf16.mxu0 0
        %2039 = vmatpush1.bf16.xpose.msra.mxu0 0
        %2040 = vmatprep.subr.bf16.mxu0 0
        %2041 = vmatpush1.bf16.xpose.msra.mxu0 0
        %2042 = vmatprep.mubr.bf16.mxu0 0
        %2043 = vmatmul.mubr.bf16.gmra.mrb[0].mxu0 %v2005
        %v2044 = vpop.f32.mrb[0].mxu0
        %v2045 = vadd.f32 0.0, %v2044
        %v2046 = vpop.f32.mrb[0].mxu0
        %v2047 = vpop.f32.mrb[0].mxu0
        %v2048 = vpop.f32.mrb[0].mxu0
        %2049 = vdwg.mxu0
        %2050 = vxpose.xlu0.b32.start [1/16] %v1723, 128
        %2051 = vxpose.xlu0.b32.cont [2/16] %v1769, 128
        %2052 = vxpose.xlu0.b32.cont [3/16] %v1815, 128
        %2053 = vxpose.xlu0.b32.cont [4/16] %v1861, 128
        %2054 = vxpose.xlu0.b32.cont [5/16] 0.0, 128
        %2055 = vxpose.xlu0.b32.cont [6/16] 0.0, 128
        %2056 = vxpose.xlu0.b32.cont [7/16] 0.0, 128
        %2057 = vxpose.xlu0.b32.cont [8/16] 0.0, 128
        %2058 = vxpose.xlu0.b32.cont [9/16] 0.0, 128
        %2059 = vxpose.xlu0.b32.cont [10/16] 0.0, 128
        %2060 = vxpose.xlu0.b32.cont [11/16] 0.0, 128
        %2061 = vxpose.xlu0.b32.cont [12/16] 0.0, 128
        %2062 = vxpose.xlu0.b32.cont [13/16] 0.0, 128
        %2063 = vxpose.xlu0.b32.cont [14/16] 0.0, 128
        %2064 = vxpose.xlu0.b32.cont [15/16] 0.0, 128
        %2065 = vxpose.xlu0.b32.end [16/16] 0.0, 128
        %v2066 = vpop.trf.xlu0
        %v2067 = vpop.trf.xlu0
        %v2068 = vpop.trf.xlu0
        %v2069 = vpop.trf.xlu0
        %v2070 = vpop.trf.xlu0
        %v2071 = vpop.trf.xlu0
        %v2072 = vpop.trf.xlu0
        %v2073 = vpop.trf.xlu0
        %v2074 = vpop.trf.xlu0
        %v2075 = vpop.trf.xlu0
        %v2076 = vpop.trf.xlu0
        %v2077 = vpop.trf.xlu0
        %v2078 = vpop.trf.xlu0
        %v2079 = vpop.trf.xlu0
        %v2080 = vpop.trf.xlu0
        %v2081 = vpop.trf.xlu0
        %2082 = vxpose.xlu0.b32.start [1/16] %v1907, 128
        %2083 = vxpose.xlu0.b32.cont [2/16] %v1953, 128
        %2084 = vxpose.xlu0.b32.cont [3/16] %v1999, 128
        %2085 = vxpose.xlu0.b32.cont [4/16] %v2045, 128
        %2086 = vxpose.xlu0.b32.cont [5/16] 0.0, 128
        %2087 = vxpose.xlu0.b32.cont [6/16] 0.0, 128
        %2088 = vxpose.xlu0.b32.cont [7/16] 0.0, 128
        %2089 = vxpose.xlu0.b32.cont [8/16] 0.0, 128
        %2090 = vxpose.xlu0.b32.cont [9/16] 0.0, 128
        %2091 = vxpose.xlu0.b32.cont [10/16] 0.0, 128
        %2092 = vxpose.xlu0.b32.cont [11/16] 0.0, 128
        %2093 = vxpose.xlu0.b32.cont [12/16] 0.0, 128
        %2094 = vxpose.xlu0.b32.cont [13/16] 0.0, 128
        %2095 = vxpose.xlu0.b32.cont [14/16] 0.0, 128
        %2096 = vxpose.xlu0.b32.cont [15/16] 0.0, 128
        %2097 = vxpose.xlu0.b32.end [16/16] 0.0, 128
        %v2098 = vpop.trf.xlu0
        %v2099 = vpop.trf.xlu0
        %v2100 = vpop.trf.xlu0
        %v2101 = vpop.trf.xlu0
        %v2102 = vpop.trf.xlu0
        %v2103 = vpop.trf.xlu0
        %v2104 = vpop.trf.xlu0
        %v2105 = vpop.trf.xlu0
        %v2106 = vpop.trf.xlu0
        %v2107 = vpop.trf.xlu0
        %v2108 = vpop.trf.xlu0
        %v2109 = vpop.trf.xlu0
        %v2110 = vpop.trf.xlu0
        %v2111 = vpop.trf.xlu0
        %v2112 = vpop.trf.xlu0
        %v2113 = vpop.trf.xlu0
        %v2114 = vpack.c.bf16 %v2098, %v2066
        %v2115 = vld [vmem:[%s666] sm:$0xf]
        %v2116 = vld [vmem:[%s666 + $0x4] sm:$0xf]
        %v2117 = vld [vmem:[%s666 + $0x8] sm:$0xf]
        %v2118 = vld [vmem:[%s666 + $0xc] sm:$0xf]
        %v2119 = vld [vmem:[%s669] sm:$0x1]
        %v2121 = vlaneseq
        %v2122 = vshrl.u32 %v2121, 7
        %v2123 = vsub.s32 0, %v2122
        %v2124 = vrot.slane %v2119, %v2123
        %v2130 = vunpack.c.l.b16 %v2115
        %v2131 = vunpack.c.l.b16 %v2116
        %v2132 = vunpack.c.l.b16 %v2117
        %v2133 = vunpack.c.l.b16 %v2118
        %v2134 = vpack.c.b16 %v2131, %v2130
        %v2135 = vpack.c.b16 %v2133, %v2132
        %v2139 = vsel %vm796, %v2114, 0
        %2141 = vmatprep.subr.bf16.mxu0 0
        %2142 = vmatpush1.bf16.msra.mxu0 %v2134
        %2143 = vmatprep.subr.bf16.mxu0 0
        %2144 = vmatpush1.bf16.msra.mxu0 %v2135
        %2145 = vmatprep.subr.bf16.mxu0 0
        %2146 = vmatpush1.bf16.msra.mxu0 0
        %2147 = vmatprep.subr.bf16.mxu0 0
        %2148 = vmatpush1.bf16.msra.mxu0 0
        %2149 = vmatprep.subr.bf16.mxu0 0
        %2150 = vmatpush1.bf16.msra.mxu0 0
        %2151 = vmatprep.subr.bf16.mxu0 0
        %2152 = vmatpush1.bf16.msra.mxu0 0
        %2153 = vmatprep.subr.bf16.mxu0 0
        %2154 = vmatpush1.bf16.msra.mxu0 0
        %2155 = vmatprep.subr.bf16.mxu0 0
        %2156 = vmatpush1.bf16.msra.mxu0 0
        %2157 = vmatprep.subr.bf16.mxu0 0
        %2158 = vmatpush1.bf16.msra.mxu0 0
        %2159 = vmatprep.subr.bf16.mxu0 0
        %2160 = vmatpush1.bf16.msra.mxu0 0
        %2161 = vmatprep.subr.bf16.mxu0 0
        %2162 = vmatpush1.bf16.msra.mxu0 0
        %2163 = vmatprep.subr.bf16.mxu0 0
        %2164 = vmatpush1.bf16.msra.mxu0 0
        %2165 = vmatprep.subr.bf16.mxu0 0
        %2166 = vmatpush1.bf16.msra.mxu0 0
        %2167 = vmatprep.subr.bf16.mxu0 0
        %2168 = vmatpush1.bf16.msra.mxu0 0
        %2169 = vmatprep.subr.bf16.mxu0 0
        %2170 = vmatpush1.bf16.msra.mxu0 0
        %2171 = vmatprep.subr.bf16.mxu0 0
        %2172 = vmatpush1.bf16.msra.mxu0 0
        %2173 = vmatprep.mubr.bf16.mxu0 0
        %2174 = vmatmul.mubr.bf16.gmra.mrb[0].mxu0 %v2139
        %v2175 = vpop.f32.mrb[0].mxu0
        %v2176 = vadd.f32 %v2124, %v2175
        %v2177 = vpop.f32.mrb[0].mxu0
        %v2178 = vpop.f32.mrb[0].mxu0
        %v2179 = vadd.f32 %v2124, %v2178
        %v2180 = vpop.f32.mrb[0].mxu0
        %2181 = vdwg.mxu0
        %v2182 = vadd.f32 %v792, %v2176
        %v2183 = vadd.f32 %v793, %v2179
        %v2184 = vld [vmem:[%s672] sm:$0x1]
        %v2185 = vld [vmem:[%s675] sm:$0x1]
        %v2186 = vsel %vm796, %v2182, 0.0
        %2187 = vadd.xlane.f32.xlu0 %v2186
        %v2188 = vpop.xlane.xlu0 %2187
        %v2189 = vsel %vm796, %v2183, 0.0
        %2190 = vadd.xlane.f32.xlu0 %v2189
        %v2191 = vpop.xlane.xlu0 %2190
        %v2192 = vmul.f32 %v2188, %v803
        %v2193 = vmul.f32 %v2191, %v803
        %v2194 = vsub.f32 %v2182, %v2192
        %v2195 = vsub.f32 %v2183, %v2193
        %v2196 = vmul.f32 %v2194, %v2194
        %v2197 = vmul.f32 %v2195, %v2195
        %v2198 = vsel %vm796, %v2196, 0.0
        %2199 = vadd.xlane.f32.xlu0 %v2198
        %v2200 = vpop.xlane.xlu0 %2199
        %v2201 = vsel %vm796, %v2197, 0.0
        %2202 = vadd.xlane.f32.xlu0 %v2201
        %v2203 = vpop.xlane.xlu0 %2202
        %v2204 = vmul.f32 %v2200, %v803
        %v2205 = vmul.f32 %v2203, %v803
        %v2206 = vadd.f32 %v2204, 1e-05
        %v2207 = vadd.f32 %v2205, 1e-05
        %v2208 = vrsqrt.pop %v2206
        %v2209 = vrsqrt.pop %v2207
        %v2210 = vmul.f32 %v2194, %v2208
        %v2211 = vmul.f32 %v2195, %v2209
        %v2213 = vlaneseq
        %v2214 = vshrl.u32 %v2213, 7
        %v2215 = vsub.s32 0, %v2214
        %v2216 = vrot.slane %v2184, %v2215
        %v2218 = vmul.f32 %v2210, %v2216
        %v2219 = vmul.f32 %v2211, %v2216
        %v2221 = vlaneseq
        %v2222 = vshrl.u32 %v2221, 7
        %v2223 = vsub.s32 0, %v2222
        %v2224 = vrot.slane %v2185, %v2223
        %v2226 = vadd.f32 %v2218, %v2224
        %v2227 = vadd.f32 %v2219, %v2224
        %v2228 = vpack.c.bf16 %v2227, %v2226
        %v2229 = vld [vmem:[%s680] sm:$0xf]
        %v2230 = vld [vmem:[%s680 + $0x4] sm:$0xf]
        %v2231 = vld [vmem:[%s680 + $0x8] sm:$0xf]
        %v2232 = vld [vmem:[%s680 + $0xc] sm:$0xf]
        %v2233 = vld [vmem:[%s683] sm:$0x1]
        %v2235 = vlaneseq
        %v2236 = vshrl.u32 %v2235, 7
        %v2237 = vsub.s32 0, %v2236
        %v2238 = vrot.slane %v2233, %v2237
        %v2244 = vunpack.c.l.b16 %v2229
        %v2245 = vunpack.c.l.b16 %v2230
        %v2246 = vunpack.c.l.b16 %v2231
        %v2247 = vunpack.c.l.b16 %v2232
        %v2248 = vpack.c.b16 %v2245, %v2244
        %v2249 = vpack.c.b16 %v2247, %v2246
        %v2253 = vsel %vm796, %v2228, 0
        %2255 = vmatprep.subr.bf16.mxu0 0
        %2256 = vmatpush1.bf16.msra.mxu0 %v2248
        %2257 = vmatprep.subr.bf16.mxu0 0
        %2258 = vmatpush1.bf16.msra.mxu0 %v2249
        %2259 = vmatprep.subr.bf16.mxu0 0
        %2260 = vmatpush1.bf16.msra.mxu0 0
        %2261 = vmatprep.subr.bf16.mxu0 0
        %2262 = vmatpush1.bf16.msra.mxu0 0
        %2263 = vmatprep.subr.bf16.mxu0 0
        %2264 = vmatpush1.bf16.msra.mxu0 0
        %2265 = vmatprep.subr.bf16.mxu0 0
        %2266 = vmatpush1.bf16.msra.mxu0 0
        %2267 = vmatprep.subr.bf16.mxu0 0
        %2268 = vmatpush1.bf16.msra.mxu0 0
        %2269 = vmatprep.subr.bf16.mxu0 0
        %2270 = vmatpush1.bf16.msra.mxu0 0
        %2271 = vmatprep.subr.bf16.mxu0 0
        %2272 = vmatpush1.bf16.msra.mxu0 0
        %2273 = vmatprep.subr.bf16.mxu0 0
        %2274 = vmatpush1.bf16.msra.mxu0 0
        %2275 = vmatprep.subr.bf16.mxu0 0
        %2276 = vmatpush1.bf16.msra.mxu0 0
        %2277 = vmatprep.subr.bf16.mxu0 0
        %2278 = vmatpush1.bf16.msra.mxu0 0
        %2279 = vmatprep.subr.bf16.mxu0 0
        %2280 = vmatpush1.bf16.msra.mxu0 0
        %2281 = vmatprep.subr.bf16.mxu0 0
        %2282 = vmatpush1.bf16.msra.mxu0 0
        %2283 = vmatprep.subr.bf16.mxu0 0
        %2284 = vmatpush1.bf16.msra.mxu0 0
        %2285 = vmatprep.subr.bf16.mxu0 0
        %2286 = vmatpush1.bf16.msra.mxu0 0
        %2287 = vmatprep.mubr.bf16.mxu0 0
        %2288 = vmatmul.mubr.bf16.gmra.mrb[0].mxu0 %v2253
        %v2289 = vpop.f32.mrb[0].mxu0
        %v2290 = vadd.f32 %v2238, %v2289
        %v2291 = vpop.f32.mrb[0].mxu0
        %v2292 = vpop.f32.mrb[0].mxu0
        %v2293 = vadd.f32 %v2238, %v2292
        %v2294 = vpop.f32.mrb[0].mxu0
        %2295 = vdwg.mxu0
        %v2296 = vmul.f32 %v2290, %v2290
        %v2297 = vmul.f32 %v2293, %v2293
        %v2298 = vmul.f32 %v2290, %v2296
        %v2299 = vmul.f32 %v2293, %v2297
        %v2300 = vmul.f32 %v2298, 0.044715
        %v2301 = vmul.f32 %v2299, 0.044715
        %v2302 = vadd.f32 %v2290, %v2300
        %v2303 = vadd.f32 %v2293, %v2301
        %v2304 = vmul.f32 %v2302, 0.7978846
        %v2305 = vmul.f32 %v2303, 0.7978846
        %v2306 = vtanh.pop %v2304
        %v2307 = vtanh.pop %v2305
        %v2308 = vadd.f32 %v2306, 1.0
        %v2309 = vadd.f32 %v2307, 1.0
        %v2310 = vmul.f32 %v2308, 0.5
        %v2311 = vmul.f32 %v2309, 0.5
        %v2312 = vmul.f32 %v2290, %v2310
        %v2313 = vmul.f32 %v2293, %v2311
        %v2314 = vpack.c.bf16 %v2313, %v2312
        %v2315 = vld [vmem:[%s688] sm:$0xf]
        %v2316 = vld [vmem:[%s688 + $0x4] sm:$0xf]
        %v2317 = vld [vmem:[%s688 + $0x8] sm:$0xf]
        %v2318 = vld [vmem:[%s688 + $0xc] sm:$0xf]
        %v2319 = vld [vmem:[%s688 + $0x10] sm:$0xf]
        %v2320 = vld [vmem:[%s688 + $0x14] sm:$0xf]
        %v2321 = vld [vmem:[%s688 + $0x18] sm:$0xf]
        %v2322 = vld [vmem:[%s688 + $0x1c] sm:$0xf]
        %v2323 = vld [vmem:[%s688 + $0x20] sm:$0xf]
        %v2324 = vld [vmem:[%s688 + $0x24] sm:$0xf]
        %v2325 = vld [vmem:[%s688 + $0x28] sm:$0xf]
        %v2326 = vld [vmem:[%s688 + $0x2c] sm:$0xf]
        %v2327 = vld [vmem:[%s688 + $0x30] sm:$0xf]
        %v2328 = vld [vmem:[%s688 + $0x34] sm:$0xf]
        %v2329 = vld [vmem:[%s688 + $0x38] sm:$0xf]
        %v2330 = vld [vmem:[%s688 + $0x3c] sm:$0xf]
        %v2331 = vld [vmem:[%s691] sm:$0x1]
        %v2333 = vlaneseq
        %v2334 = vshrl.u32 %v2333, 7
        %v2335 = vsub.s32 0, %v2334
        %v2336 = vrot.slane %v2331, %v2335
        %v2354 = vunpack.c.l.b16 %v2315
        %v2355 = vunpack.c.l.b16 %v2316
        %v2356 = vunpack.c.l.b16 %v2317
        %v2357 = vunpack.c.l.b16 %v2318
        %v2358 = vunpack.c.l.b16 %v2319
        %v2359 = vunpack.c.l.b16 %v2320
        %v2360 = vunpack.c.l.b16 %v2321
        %v2361 = vunpack.c.l.b16 %v2322
        %v2362 = vunpack.c.l.b16 %v2323
        %v2363 = vunpack.c.l.b16 %v2324
        %v2364 = vunpack.c.l.b16 %v2325
        %v2365 = vunpack.c.l.b16 %v2326
        %v2366 = vunpack.c.l.b16 %v2327
        %v2367 = vunpack.c.l.b16 %v2328
        %v2368 = vunpack.c.l.b16 %v2329
        %v2369 = vunpack.c.l.b16 %v2330
        %v2370 = vpack.c.b16 %v2355, %v2354
        %v2371 = vpack.c.b16 %v2357, %v2356
        %v2372 = vpack.c.b16 %v2359, %v2358
        %v2373 = vpack.c.b16 %v2361, %v2360
        %v2374 = vpack.c.b16 %v2363, %v2362
        %v2375 = vpack.c.b16 %v2365, %v2364
        %v2376 = vpack.c.b16 %v2367, %v2366
        %v2377 = vpack.c.b16 %v2369, %v2368
        %2386 = vmatprep.subr.bf16.mxu0 0
        %2387 = vmatpush1.bf16.msra.mxu0 %v2370
        %2388 = vmatprep.subr.bf16.mxu0 0
        %2389 = vmatpush1.bf16.msra.mxu0 %v2371
        %2390 = vmatprep.subr.bf16.mxu0 0
        %2391 = vmatpush1.bf16.msra.mxu0 %v2372
        %2392 = vmatprep.subr.bf16.mxu0 0
        %2393 = vmatpush1.bf16.msra.mxu0 %v2373
        %2394 = vmatprep.subr.bf16.mxu0 0
        %2395 = vmatpush1.bf16.msra.mxu0 %v2374
        %2396 = vmatprep.subr.bf16.mxu0 0
        %2397 = vmatpush1.bf16.msra.mxu0 %v2375
        %2398 = vmatprep.subr.bf16.mxu0 0
        %2399 = vmatpush1.bf16.msra.mxu0 %v2376
        %2400 = vmatprep.subr.bf16.mxu0 0
        %2401 = vmatpush1.bf16.msra.mxu0 %v2377
        %2402 = vmatprep.subr.bf16.mxu0 0
        %2403 = vmatpush1.bf16.msra.mxu0 0
        %2404 = vmatprep.subr.bf16.mxu0 0
        %2405 = vmatpush1.bf16.msra.mxu0 0
        %2406 = vmatprep.subr.bf16.mxu0 0
        %2407 = vmatpush1.bf16.msra.mxu0 0
        %2408 = vmatprep.subr.bf16.mxu0 0
        %2409 = vmatpush1.bf16.msra.mxu0 0
        %2410 = vmatprep.subr.bf16.mxu0 0
        %2411 = vmatpush1.bf16.msra.mxu0 0
        %2412 = vmatprep.subr.bf16.mxu0 0
        %2413 = vmatpush1.bf16.msra.mxu0 0
        %2414 = vmatprep.subr.bf16.mxu0 0
        %2415 = vmatpush1.bf16.msra.mxu0 0
        %2416 = vmatprep.subr.bf16.mxu0 0
        %2417 = vmatpush1.bf16.msra.mxu0 0
        %2418 = vmatprep.mubr.bf16.mxu0 0
        %2419 = vmatmul.mubr.bf16.gmra.mrb[0].mxu0 %v2314
        %v2420 = vpop.f32.mrb[0].mxu0
        %v2421 = vadd.f32 %v2336, %v2420
        %v2422 = vpop.f32.mrb[0].mxu0
        %v2423 = vpop.f32.mrb[0].mxu0
        %v2424 = vadd.f32 %v2336, %v2423
        %v2425 = vpop.f32.mrb[0].mxu0
        %2426 = vdwg.mxu0
        %v2427 = vadd.f32 %v2182, %v2421
        %v2428 = vadd.f32 %v2183, %v2424
        %2429 = vst.msk [vmem:[#allocation2] sm:$0xff] %vm796, %v2427
        %2430 = vst.msk [vmem:[#allocation2 + $0x8] sm:$0xff] %vm796, %v2428
        %p2431 = scmp.eq.s32.totalorder %s32, 1
        // Predicated region
        $region85: #{tpu_custom_call.1} parent=79 // pred_check
          %p2432 = pneg %p2431
        $region86: #{tpu_custom_call.1} parent=79 // pred_check_branch
          %2434 = sbr.rel (%p2432) target = $region88
        $region87: #{tpu_custom_call.1} parent=79 // pred_region
          %2435 = vst.msk [vmem:[#allocation3] sm:$0xff] %vm796, %v2427
          %2436 = vst.msk [vmem:[#allocation3 + $0x8] sm:$0xff] %vm796, %v2428
        $region88: #{tpu_custom_call.1} parent=79 // pred_fallthru
          _
        // Predicated region
        $region89: #{tpu_custom_call.1} parent=79 // pred_check
          %p2437 = pneg %p437
        $region90: #{tpu_custom_call.1} parent=79 // pred_check_branch
          %2439 = sbr.rel (%p2437) target = $region92
        $region91: #{tpu_custom_call.1} parent=79 // pred_region
          %s2440 = smul.u32 2, %s31
          %s2442 = ssub.s32 256, 256
          %2443 = vsyncadd [#allocation4], %s2442
          %s2444 = smul.addr %s2440, 128
          %s2445 = scalar_lea.hbm %s15, %s2444
          %s2446 = sshll.u32 [#allocation3], 4
          %s2447 = int_to_ptr.vmem [resolvable:$true] %s2446
          %2452 = dma.vmem_to_hbm [thread:$0]  %s2447, 256, %s2445, [#allocation4], 128, 128, 8
        $region92: #{tpu_custom_call.1} parent=79 // pred_fallthru
          _
        // Predicated region
        $region93: #{tpu_custom_call.1} parent=79 // pred_check
          %p2453 = pneg %p437
        $region94: #{tpu_custom_call.1} parent=79 // pred_check_branch
          %2455 = sbr.rel (%p2453) target = $region96
        $region95: #{tpu_custom_call.1} parent=79 // pred_region
          %2456 = dma.done [#allocation4], 256
        $region96: #{tpu_custom_call.1} parent=79 // pred_fallthru
          _
      $region80: #{tpu_custom_call.1} parent=5 // pred_fallthru
        _
      %p2457 = scmp.le.s32.totalorder 2, %s22
      // Predicated region
      $region97: #{tpu_custom_call.1} parent=5 // pred_check
        %p2458 = pneg %p2457
      $region98: #{tpu_custom_call.1} parent=5 // pred_check_branch
        %2460 = sbr.rel (%p2458) target = $region100
      $region99: #{tpu_custom_call.1} parent=5 // pred_region
        %s2461 = ssub.s32 %s22, 2
      $region100: #{tpu_custom_call.1} parent=5 // pred_fallthru
        _
    $region6: #{tpu_custom_call.1} parent=1 // loop_footer
      %s26 = sadd.s32 1, %s22
    $region7: #{tpu_custom_call.1} parent=1 // loop_footer_branch
      %21 = sbr.rel target = $region3
    $region8: #{tpu_custom_call.1} parent=1 // loop_exit
      _
    %2462 = vsyncpa [#allocation4], 1
    %s2463 = scalar_lea.sflag [#allocation4], 1
    %2464 = vsyncpa %s2463, 1

</llo_original>
